<compile_context>
chip_gen: v7x
topology: tpu7x:2x2x1
jax: 0.10.0
libtpu: 0.0.40
codegen_flags: <defaults>
</compile_context>

<pallas_src>
import functools

import jax
import jax.numpy as jnp
from jax.experimental import pallas as pl
from jax.experimental.pallas import tpu as pltpu

WS_EPS = 1e-5   # WeightStandardizedConv2d eps (float32 inputs)
GN_EPS = 1e-5   # nn.GroupNorm default eps

# Set to jnp.bfloat16 on v6e/v7x for ~2x MXU throughput and half the VMEM/HBM
# bytes of the conv operands (accumulation and SiLU stay f32).  Kept f32 here
# so the strict f32 reference check below passes.
CONV_COMPUTE_DTYPE = jnp.float32

# Explicit scoped-VMEM request: well under v7x's 64 MiB physical (~25%
# headroom), trivially fine on v5e/v6e (128 MiB).
_VMEM_LIMIT = 48 * 1024 * 1024
# Per-grid-step working-set target used when auto-picking tile_h.
_TILE_VMEM_BUDGET = 12 * 1024 * 1024

# pltpu.CompilerParams is current; very old jax releases named it
# TPUCompilerParams.  Tiny shim so the script runs on either.
_CompilerParams = getattr(pltpu, "CompilerParams", None) or getattr(
    pltpu, "TPUCompilerParams")


def _compiler_params(dims):
    return _CompilerParams(dimension_semantics=dims,
                           vmem_limit_bytes=_VMEM_LIMIT)


# ----------------------------------------------------------------------------
# In-kernel 3x3 conv over a halo'd slab (shared by both conv kernels)
# ----------------------------------------------------------------------------
def _conv3x3_from_slab(slab, w_ref, bias, *, tile_h, width, cin):
    """slab: (tile_h+2, W, Cin) f32, zero rows at image top/bottom boundaries.
    w_ref: (3, 3*Cin, Cout) standardized weights, layout [kh, kw*Cin+ci, co].
    Returns f32 (tile_h*W, Cout) conv output (bias already added)."""
    # kw taps folded into K: build ONE shifted operand (left / centre / right
    # images concatenated on the lane axis).  The W shift is a single
    # zero-filled shifted copy per direction (one VMEM pass), NOT 9 per-tap
    # extent-changing slices.  (pltpu.roll on the flattened slab is an
    # XLU-slot alternative for lane-aligned channel counts.)
    zcol = jnp.zeros((tile_h + 2, 1, cin), slab.dtype)
    left = jnp.concatenate([zcol, slab[:, :width - 1, :]], axis=1)   # x[h, w-1]
    right = jnp.concatenate([slab[:, 1:, :], zcol], axis=1)          # x[h, w+1]
    xcat = jnp.concatenate([left, slab, right], axis=-1)             # (th+2, W, 3Cin)
    xcat = xcat.astype(w_ref.dtype)

    m = tile_h * width

    def tap(kh):
        # leading-axis slice (cheap view) + free reshape when W % 8 == 0
        return xcat[kh:kh + tile_h].reshape(m, 3 * cin)

    # accumulator initialized from the first matmul + bias (no zeros pass)
    acc = jnp.dot(tap(0), w_ref[0], preferred_element_type=jnp.float32) + bias
    acc = acc + jnp.dot(tap(1), w_ref[1], preferred_element_type=jnp.float32)
    acc = acc + jnp.dot(tap(2), w_ref[2], preferred_element_type=jnp.float32)
    return acc


def _write_stats(stats_ref, acc):
    """Per-tile per-channel sum / sum-of-squares for the GroupNorm fold."""
    s = jnp.sum(acc, axis=0, keepdims=True)
    sq = jnp.sum(acc * acc, axis=0, keepdims=True)
    stats_ref[0] = jnp.concatenate([s, sq], axis=0)          # (2, Cout)


# ----------------------------------------------------------------------------
# Pallas kernels
# ----------------------------------------------------------------------------
def _conv3x3_kernel(x_ref, top_ref, bot_ref, w_ref, b_ref, y_ref, stats_ref, *,
                    tile_h, width, cin, cout):
    """3x3 WS-conv over one H-tile of one batch image (+ GN partial stats).
    top/bot refs hold the single halo row above/below the tile (zero rows at
    the image boundary, prepared by the wrapper)."""
    slab = jnp.concatenate([top_ref[...], x_ref[...], bot_ref[...]], axis=0)
    acc = _conv3x3_from_slab(slab, w_ref, b_ref[...],
                             tile_h=tile_h, width=width, cin=cin)
    _write_stats(stats_ref, acc)
    y_ref[...] = acc.reshape(tile_h, width, cout)


def _act_conv3x3_kernel(y1_ref, top_ref, bot_ref, a_ref, b_ref, w_ref, bias_ref,
                        y_ref, stats_ref, *, tile_h, width, cin, cout):
    """Fused: h1 = SiLU(y1 * a + b) (block1's folded GN + time scale/shift +
    SiLU, recomputed per tile incl. halo rows), then block2's 3x3 WS-conv over
    this H-tile (+ GN partial stats).  No h1 HBM round trip, no whole-image
    scratch, no special first grid step."""
    a = a_ref[...]          # (1, Cin)
    b = b_ref[...]

    def act(v):
        z = v * a + b
        return z * jax.nn.sigmoid(z)

    j = pl.program_id(1)
    last = pl.num_programs(1) - 1
    # Halo rows at the image boundary must stay exactly zero (conv padding),
    # but SiLU(0*a+b) != 0 -> mask them after activation.
    top = jnp.where(j == 0, 0.0, act(top_ref[...]))
    bot = jnp.where(j == last, 0.0, act(bot_ref[...]))
    slab = jnp.concatenate([top, act(y1_ref[...]), bot], axis=0)

    acc = _conv3x3_from_slab(slab, w_ref, bias_ref[...],
                             tile_h=tile_h, width=width, cin=cin)
    _write_stats(stats_ref, acc)
    y_ref[...] = acc.reshape(tile_h, width, cout)


def _apply_resconv_kernel(y2_ref, a_ref, b_ref, x_ref, wres_ref, bres_ref,
                          out_ref, *, tile_h, width, cin, cout):
    """out = SiLU(y2 * a + b) + conv1x1(x), one H-tile per grid step."""
    z = y2_ref[...] * a_ref[...] + b_ref[...]
    h = z * jax.nn.sigmoid(z)                               # (tile_h, W, Cout)
    xf = x_ref[...].reshape(tile_h * width, cin)
    res = jnp.dot(xf, wres_ref[...],
                  preferred_element_type=jnp.float32) + bres_ref[...]
    out_ref[...] = h + res.reshape(tile_h, width, cout)


def _apply_identity_kernel(y2_ref, a_ref, b_ref, x_ref, out_ref, *,
                           tile_h, width, cout):
    """out = SiLU(y2 * a + b) + x (dim == dim_out: no 1x1 matmul at all)."""
    z = y2_ref[...] * a_ref[...] + b_ref[...]
    h = z * jax.nn.sigmoid(z)
    out_ref[...] = h + x_ref[...]


# ----------------------------------------------------------------------------
# pallas_call wrappers
# ----------------------------------------------------------------------------
def _make_halos(img, tile_h):
    """Per-tile halo rows: top[n, j] = img[n, j*tile_h - 1] (zeros for j==0),
    bot[n, j] = img[n, (j+1)*tile_h] (zeros for the last tile).  Cheap strided
    slices in XLA (2 rows per tile), instead of keeping the whole padded image
    resident in VMEM."""
    n, h, w, c = img.shape
    zrow = jnp.zeros((n, 1, w, c), img.dtype)
    top = jnp.concatenate([zrow, img[:, tile_h - 1:h - 1:tile_h]], axis=1)
    bot = jnp.concatenate([img[:, tile_h:h:tile_h], zrow], axis=1)
    return top, bot                                          # each (N, T, W, C)


def _run_conv3x3(x, w3, bias, tile_h):
    n, h, w, cin = x.shape
    cout = w3.shape[2]
    t = h // tile_h
    top, bot = _make_halos(x, tile_h)
    kern = functools.partial(_conv3x3_kernel, tile_h=tile_h, width=w,
                             cin=cin, cout=cout)
    return pl.pallas_call(
        kern,
        out_shape=(jax.ShapeDtypeStruct((n, h, w, cout), jnp.float32),
                   jax.ShapeDtypeStruct((n, t, 2, cout), jnp.float32)),
        grid=(n, t),
        in_specs=[
            pl.BlockSpec((None, tile_h, w, cin), lambda i, j: (i, j, 0, 0)),
            pl.BlockSpec((None, 1, w, cin), lambda i, j: (i, j, 0, 0)),
            pl.BlockSpec((None, 1, w, cin), lambda i, j: (i, j, 0, 0)),
            pl.BlockSpec((3, 3 * cin, cout), lambda i, j: (0, 0, 0)),
            pl.BlockSpec((1, cout), lambda i, j: (0, 0)),
        ],
        out_specs=(
            pl.BlockSpec((None, tile_h, w, cout), lambda i, j: (i, j, 0, 0)),
            pl.BlockSpec((None, 1, 2, cout), lambda i, j: (i, j, 0, 0)),
        ),
        compiler_params=_compiler_params(("parallel", "parallel")),
    )(x, top, bot, w3, bias.reshape(1, cout))


def _run_act_conv3x3(y1, a1, b1, w3, bias, tile_h):
    n, h, w, cin = y1.shape
    cout = w3.shape[2]
    t = h // tile_h
    top, bot = _make_halos(y1, tile_h)
    kern = functools.partial(_act_conv3x3_kernel, tile_h=tile_h, width=w,
                             cin=cin, cout=cout)
    return pl.pallas_call(
        kern,
        out_shape=(jax.ShapeDtypeStruct((n, h, w, cout), jnp.float32),
                   jax.ShapeDtypeStruct((n, t, 2, cout), jnp.float32)),
        grid=(n, t),
        in_specs=[
            pl.BlockSpec((None, tile_h, w, cin), lambda i, j: (i, j, 0, 0)),
            pl.BlockSpec((None, 1, w, cin), lambda i, j: (i, j, 0, 0)),
            pl.BlockSpec((None, 1, w, cin), lambda i, j: (i, j, 0, 0)),
            pl.BlockSpec((None, 1, cin), lambda i, j: (i, 0, 0)),
            pl.BlockSpec((None, 1, cin), lambda i, j: (i, 0, 0)),
            pl.BlockSpec((3, 3 * cin, cout), lambda i, j: (0, 0, 0)),
            pl.BlockSpec((1, cout), lambda i, j: (0, 0)),
        ],
        out_specs=(
            pl.BlockSpec((None, tile_h, w, cout), lambda i, j: (i, j, 0, 0)),
            pl.BlockSpec((None, 1, 2, cout), lambda i, j: (i, j, 0, 0)),
        ),
        compiler_params=_compiler_params(("parallel", "parallel")),
    )(y1, top, bot, a1, b1, w3, bias.reshape(1, cout))


def _run_apply_residual(y2, a2, b2, x, wres, bres, tile_h):
    n, h, w, cout = y2.shape
    cin = x.shape[3]
    t = h // tile_h
    base_specs = [
        pl.BlockSpec((None, tile_h, w, cout), lambda i, j: (i, j, 0, 0)),
        pl.BlockSpec((None, 1, cout), lambda i, j: (i, 0, 0)),
        pl.BlockSpec((None, 1, cout), lambda i, j: (i, 0, 0)),
        pl.BlockSpec((None, tile_h, w, cin), lambda i, j: (i, j, 0, 0)),
    ]
    if wres is None:      # dim == dim_out: identity residual, no 1x1 matmul
        kern = functools.partial(_apply_identity_kernel, tile_h=tile_h,
                                 width=w, cout=cout)
        in_specs = base_specs
        args = (y2, a2, b2, x)
    else:
        kern = functools.partial(_apply_resconv_kernel, tile_h=tile_h,
                                 width=w, cin=cin, cout=cout)
        in_specs = base_specs + [
            pl.BlockSpec((cin, cout), lambda i, j: (0, 0)),
            pl.BlockSpec((1, cout), lambda i, j: (0, 0)),
        ]
        args = (y2, a2, b2, x, wres, bres.reshape(1, cout))
    return pl.pallas_call(
        kern,
        out_shape=jax.ShapeDtypeStruct((n, h, w, cout), jnp.float32),
        grid=(n, t),
        in_specs=in_specs,
        out_specs=pl.BlockSpec((None, tile_h, w, cout),
                               lambda i, j: (i, j, 0, 0)),
        compiler_params=_compiler_params(("parallel", "parallel")),
    )(*args)


# ----------------------------------------------------------------------------
# Tiny wrapper-side math (XLA): weight standardization, GN stat folding, tiling
# ----------------------------------------------------------------------------
def _standardize_conv3x3(w_oihw):
    """WeightStandardizedConv2d -> (3, 3*Cin, Cout), index [kh, kw*Cin+ci, co]."""
    mean = jnp.mean(w_oihw, axis=(1, 2, 3), keepdims=True)
    var = jnp.mean((w_oihw - mean) ** 2, axis=(1, 2, 3), keepdims=True)  # biased
    wn = (w_oihw - mean) * jax.lax.rsqrt(var + WS_EPS)
    cout, cin = w_oihw.shape[0], w_oihw.shape[1]
    return jnp.transpose(wn, (2, 3, 1, 0)).reshape(3, 3 * cin, cout).astype(
        CONV_COMPUTE_DTYPE)


def _fold_gn_affine(stats, gamma, beta, groups, hw, scale=None, shift=None):
    """Fold GroupNorm (from per-tile sum/sumsq) + gamma/beta (+ optional
    time-emb (scale+1)/shift) into per-(batch, channel) a, b:  out = y*a + b.
    NOTE: var = E[x^2] - E[x]^2 in f32; fine for unit-scale activations."""
    psum = jnp.sum(stats, axis=1)                    # (N, 2, C) reduce over tiles
    ssum, ssq = psum[:, 0, :], psum[:, 1, :]
    n, c = ssum.shape
    cpg = c // groups
    cnt = float(hw * cpg)
    g_sum = ssum.reshape(n, groups, cpg).sum(axis=2)
    g_sq = ssq.reshape(n, groups, cpg).sum(axis=2)
    mean = g_sum / cnt
    var = g_sq / cnt - mean * mean                   # biased variance
    inv = jax.lax.rsqrt(var + GN_EPS)
    mean_c = jnp.repeat(mean, cpg, axis=1)           # (N, C)
    inv_c = jnp.repeat(inv, cpg, axis=1)
    a = gamma[None, :] * inv_c
    b = beta[None, :] - mean_c * a
    if scale is not None:
        a = a * (scale + 1.0)
        b = b * (scale + 1.0) + shift
    return a.astype(jnp.float32), b.astype(jnp.float32)


def _pick_tile_h(h, w, cin, cout, itemsize=4):
    """Largest divisor of H whose per-step working set fits the VMEM budget,
    preferring >= 2 grid steps along H for pipeline depth / megacore."""
    cands = []
    for d in range(1, h + 1):
        if h % d:
            continue
        slab = (d + 2) * w * cin
        work = itemsize * (
            slab * 5                      # slab + shifted copies + 3*Cin operand
            + d * w * cout * 4            # f32 acc + double-buffered output tile
            + 2 * d * w * cin             # double-buffered input body tile
            + 2 * 9 * cin * cout)         # double-buffered conv weights
        if work <= _TILE_VMEM_BUDGET:
            cands.append(d)
    if not cands:
        return 1
    multi = [d for d in cands if d < h]
    return max(multi) if multi else max(cands)


# ----------------------------------------------------------------------------
# Full ResnetBlock forward
# ----------------------------------------------------------------------------
# TODO(synk): the surrounding Unet (init/final convs, attention, up/down
# sampling, time-embedding MLP chain) is composed from this block in plain
# XLA and is not covered by these kernels.
def resnet_block_forward(params, x_nchw, time_emb, tile_h=None):
    n, cin, h, w = x_nchw.shape
    cout = params["conv1_w"].shape[0]
    groups = params["groups"]
    hw = h * w
    if tile_h is None:
        tile_h = _pick_tile_h(h, w, max(cin, cout), cout)
    x = jnp.transpose(x_nchw, (0, 2, 3, 1)).astype(jnp.float32)      # NHWC

    # time MLP: SiLU -> Linear -> (scale, shift); microscopic -> plain XLA,
    # folded into the per-channel affine applied inside the Pallas kernels.
    ss = jax.nn.silu(time_emb) @ params["mlp_w"] + params["mlp_b"]   # (N, 2*Cout)
    scale, shift = ss[:, :cout], ss[:, cout:]

    # block1: tiled WS-conv3x3 (+ per-tile GN partial stats)
    w1 = _standardize_conv3x3(params["conv1_w"])
    y1, st1 = _run_conv3x3(x, w1, params["conv1_b"], tile_h)
    a1, b1 = _fold_gn_affine(st1, params["gn1_g"], params["gn1_b"], groups, hw,
                             scale, shift)

    # block2: fused per-tile (GN-affine + SiLU of block1) -> WS-conv3x3
    w2 = _standardize_conv3x3(params["conv2_w"])
    y2, st2 = _run_act_conv3x3(y1, a1[:, None, :], b1[:, None, :], w2,
                               params["conv2_b"], tile_h)
    a2, b2 = _fold_gn_affine(st2, params["gn2_g"], params["gn2_b"], groups, hw)

    # final: GN-affine + SiLU of block2, fused with the residual path
    if params.get("res_w") is not None:
        wres = jnp.transpose(params["res_w"].reshape(cout, cin),
                             (1, 0)).astype(jnp.float32)
        bres = params["res_b"].astype(jnp.float32)
    else:                                    # dim == dim_out -> identity residual
        wres = None
        bres = None
    out = _run_apply_residual(y2, a2[:, None, :], b2[:, None, :], x, wres, bres,
                              tile_h)
    return jnp.transpose(out, (0, 3, 1, 2))                          # back to NCHW


# ----------------------------------------------------------------------------
# Pure-JAX reference (mirrors the PyTorch module) for the correctness check
# ----------------------------------------------------------------------------
def _ref_ws_conv(x_nhwc, w_oihw, b):
    mean = jnp.mean(w_oihw, axis=(1, 2, 3), keepdims=True)
    var = jnp.mean((w_oihw - mean) ** 2, axis=(1, 2, 3), keepdims=True)
    wn = (w_oihw - mean) * jax.lax.rsqrt(var + WS_EPS)
    w_hwio = jnp.transpose(wn, (2, 3, 1, 0))
    y = jax.lax.conv_general_dilated(x_nhwc, w_hwio, (1, 1), "SAME",
                                     dimension_numbers=("NHWC", "HWIO", "NHWC"))
    return y + b


def _ref_gn(x_nhwc, gamma, beta, groups):
    N, H, W, C = x_nhwc.shape
    xg = x_nhwc.reshape(N, H * W, groups, C // groups)
    m = jnp.mean(xg, axis=(1, 3), keepdims=True)
    v = jnp.mean((xg - m) ** 2, axis=(1, 3), keepdims=True)
    xn = (xg - m) * jax.lax.rsqrt(v + GN_EPS)
    return xn.reshape(N, H, W, C) * gamma + beta


def reference_forward(params, x_nchw, time_emb):
    groups = params["groups"]
    Cout = params["conv1_w"].shape[0]
    x = jnp.transpose(x_nchw, (0, 2, 3, 1))
    ss = jax.nn.silu(time_emb) @ params["mlp_w"] + params["mlp_b"]
    scale, shift = ss[:, :Cout], ss[:, Cout:]
    scale = scale[:, None, None, :]
    shift = shift[:, None, None, :]
    h = _ref_ws_conv(x, params["conv1_w"], params["conv1_b"])
    h = _ref_gn(h, params["gn1_g"], params["gn1_b"], groups)
    h = h * (scale + 1.0) + shift
    h = jax.nn.silu(h)
    h = _ref_ws_conv(h, params["conv2_w"], params["conv2_b"])
    h = _ref_gn(h, params["gn2_g"], params["gn2_b"], groups)
    h = jax.nn.silu(h)
    wres = jnp.transpose(params["res_w"].reshape(Cout, -1), (1, 0))
    res = x @ wres + params["res_b"]
    out = h + res
    return jnp.transpose(out, (0, 3, 1, 2))


# ----------------------------------------------------------------------------
if __name__ == "__main__":
    key = jax.random.PRNGKey(0)
    N, Cin, Cout, H, W, T, groups = 2, 4, 8, 16, 16, 32, 8
    keys = jax.random.split(key, 14)
    x = jax.random.normal(keys[0], (N, Cin, H, W), jnp.float32)
    time_emb = jax.random.normal(keys[1], (N, T), jnp.float32)

    params = dict(
        groups=groups,
        conv1_w=0.2 * jax.random.normal(keys[2], (Cout, Cin, 3, 3), jnp.float32),
        conv1_b=0.1 * jax.random.normal(keys[3], (Cout,), jnp.float32),
        gn1_g=1.0 + 0.1 * jax.random.normal(keys[4], (Cout,), jnp.float32),
        gn1_b=0.1 * jax.random.normal(keys[5], (Cout,), jnp.float32),
        conv2_w=0.2 * jax.random.normal(keys[6], (Cout, Cout, 3, 3), jnp.float32),
        conv2_b=0.1 * jax.random.normal(keys[7], (Cout,), jnp.float32),
        gn2_g=1.0 + 0.1 * jax.random.normal(keys[8], (Cout,), jnp.float32),
        gn2_b=0.1 * jax.random.normal(keys[9], (Cout,), jnp.float32),
        mlp_w=0.2 * jax.random.normal(keys[10], (T, 2 * Cout), jnp.float32),
        mlp_b=0.1 * jax.random.normal(keys[11], (2 * Cout,), jnp.float32),
        res_w=0.2 * jax.random.normal(keys[12], (Cout, Cin, 1, 1), jnp.float32),
        res_b=0.1 * jax.random.normal(keys[13], (Cout,), jnp.float32),
    )

    out = resnet_block_forward(params, x, time_emb)
    out = jax.block_until_ready(out)
    assert out.shape == (N, Cout, H, W), out.shape

    ref = reference_forward(params, x, time_emb)
    max_err = float(jnp.max(jnp.abs(out - ref)))
    assert max_err < 2e-3, f"mismatch vs reference: {max_err}"

    print("KERNEL_OK")
</pallas_src>

<mosaic_0001>
module attributes {stable_mosaic.version = 11 : i64} {
  func.func @_conv3x3_kernel(%arg0: i32, %arg1: i32, %arg2: memref<1x8x16x4xf32, #tpu.memory_space<vmem>>, %arg3: memref<1x1x16x4xf32, #tpu.memory_space<vmem>>, %arg4: memref<1x1x16x4xf32, #tpu.memory_space<vmem>>, %arg5: memref<3x12x8xf32, #tpu.memory_space<vmem>>, %arg6: memref<1x8xf32, #tpu.memory_space<vmem>>, %arg7: memref<1x8x16x8xf32, #tpu.memory_space<vmem>>, %arg8: memref<1x1x2x8xf32, #tpu.memory_space<vmem>>) attributes {dimension_semantics = [#tpu.dimension_semantics<parallel>, #tpu.dimension_semantics<parallel>], iteration_bounds = array<i64: 2, 2>, scalar_prefetch = 0 : i64, scratch_operands = 0 : i64, tpu.core_type = #tpu.core_type<tc>, window_params = [{transform_indices = @transform_0, window_bounds = array<i64: 1, 8, 16, 4>}, {transform_indices = @transform_1, window_bounds = array<i64: 1, 1, 16, 4>}, {transform_indices = @transform_2, window_bounds = array<i64: 1, 1, 16, 4>}, {pipeline_mode = #tpu.pipeline_mode<synchronous>, transform_indices = @transform_3, window_bounds = array<i64: 3, 12, 8>}, {pipeline_mode = #tpu.pipeline_mode<synchronous>, transform_indices = @transform_4, window_bounds = array<i64: 1, 8>}, {transform_indices = @transform_5, window_bounds = array<i64: 1, 8, 16, 8>}, {transform_indices = @transform_6, window_bounds = array<i64: 1, 1, 2, 8>}]} {
    %c0 = arith.constant 0 : index
    %c0_0 = arith.constant 0 : index
    %c0_1 = arith.constant 0 : index
    %c0_2 = arith.constant 0 : index
    %0 = vector.load %arg3[%c0, %c0_0, %c0_1, %c0_2] : memref<1x1x16x4xf32, #tpu.memory_space<vmem>>, vector<1x1x16x4xf32>
    %1 = vector.shape_cast %0 : vector<1x1x16x4xf32> to vector<1x16x4xf32>
    %c0_3 = arith.constant 0 : index
    %c0_4 = arith.constant 0 : index
    %c0_5 = arith.constant 0 : index
    %c0_6 = arith.constant 0 : index
    %2 = vector.load %arg2[%c0_3, %c0_4, %c0_5, %c0_6] : memref<1x8x16x4xf32, #tpu.memory_space<vmem>>, vector<1x8x16x4xf32>
    %3 = vector.shape_cast %2 : vector<1x8x16x4xf32> to vector<8x16x4xf32>
    %c0_7 = arith.constant 0 : index
    %c0_8 = arith.constant 0 : index
    %c0_9 = arith.constant 0 : index
    %c0_10 = arith.constant 0 : index
    %4 = vector.load %arg4[%c0_7, %c0_8, %c0_9, %c0_10] : memref<1x1x16x4xf32, #tpu.memory_space<vmem>>, vector<1x1x16x4xf32>
    %5 = vector.shape_cast %4 : vector<1x1x16x4xf32> to vector<1x16x4xf32>
    %6 = tpu.concatenate %1, %3, %5 in 0 : vector<1x16x4xf32>, vector<8x16x4xf32>, vector<1x16x4xf32> -> vector<10x16x4xf32>
    %c0_11 = arith.constant 0 : index
    %c0_12 = arith.constant 0 : index
    %7 = vector.load %arg6[%c0_11, %c0_12] : memref<1x8xf32, #tpu.memory_space<vmem>>, vector<1x8xf32>
    %cst = arith.constant 0.000000e+00 : f32
    %8 = vector.broadcast %cst : f32 to vector<10x1x4xf32>
    %9 = vector.extract_strided_slice %6 {offsets = [0, 0, 0], sizes = [10, 15, 4], strides = [1, 1, 1]} : vector<10x16x4xf32> to vector<10x15x4xf32>
    %10 = tpu.concatenate %8, %9 in 1 : vector<10x1x4xf32>, vector<10x15x4xf32> -> vector<10x16x4xf32>
    %11 = vector.extract_strided_slice %6 {offsets = [0, 1, 0], sizes = [10, 15, 4], strides = [1, 1, 1]} : vector<10x16x4xf32> to vector<10x15x4xf32>
    %12 = tpu.concatenate %11, %8 in 1 : vector<10x15x4xf32>, vector<10x1x4xf32> -> vector<10x16x4xf32>
    %13 = tpu.concatenate %10, %6, %12 in 2 : vector<10x16x4xf32>, vector<10x16x4xf32>, vector<10x16x4xf32> -> vector<10x16x12xf32>
    %14 = vector.extract_strided_slice %13 {offsets = [0, 0, 0], sizes = [8, 16, 12], strides = [1, 1, 1]} : vector<10x16x12xf32> to vector<8x16x12xf32>
    %15 = vector.shape_cast %14 : vector<8x16x12xf32> to vector<128x12xf32>
    %c0_13 = arith.constant 0 : index
    %c0_14 = arith.constant 0 : index
    %c0_15 = arith.constant 0 : index
    %16 = vector.load %arg5[%c0_13, %c0_14, %c0_15] : memref<3x12x8xf32, #tpu.memory_space<vmem>>, vector<1x12x8xf32>
    %17 = vector.shape_cast %16 : vector<1x12x8xf32> to vector<12x8xf32>
    %cst_16 = arith.constant dense<0.000000e+00> : vector<128x8xf32>
    %18 = tpu.matmul %15, %17, %cst_16 {dimension_numbers = #tpu.dot_dimension_numbers<[1], [0], [0], [1], [0, 0, 1, 1], [], []>} : vector<128x12xf32>, vector<12x8xf32>, vector<128x8xf32> -> vector<128x8xf32>
    %19 = vector.broadcast %7 : vector<1x8xf32> to vector<128x8xf32>
    %20 = arith.addf %18, %19 : vector<128x8xf32>
    %21 = vector.extract_strided_slice %13 {offsets = [1, 0, 0], sizes = [8, 16, 12], strides = [1, 1, 1]} : vector<10x16x12xf32> to vector<8x16x12xf32>
    %22 = vector.shape_cast %21 : vector<8x16x12xf32> to vector<128x12xf32>
    %c1 = arith.constant 1 : index
    %c0_17 = arith.constant 0 : index
    %c0_18 = arith.constant 0 : index
    %23 = vector.load %arg5[%c1, %c0_17, %c0_18] : memref<3x12x8xf32, #tpu.memory_space<vmem>>, vector<1x12x8xf32>
    %24 = vector.shape_cast %23 : vector<1x12x8xf32> to vector<12x8xf32>
    %cst_19 = arith.constant dense<0.000000e+00> : vector<128x8xf32>
    %25 = tpu.matmul %22, %24, %cst_19 {dimension_numbers = #tpu.dot_dimension_numbers<[1], [0], [0], [1], [0, 0, 1, 1], [], []>} : vector<128x12xf32>, vector<12x8xf32>, vector<128x8xf32> -> vector<128x8xf32>
    %26 = arith.addf %20, %25 : vector<128x8xf32>
    %27 = vector.extract_strided_slice %13 {offsets = [2, 0, 0], sizes = [8, 16, 12], strides = [1, 1, 1]} : vector<10x16x12xf32> to vector<8x16x12xf32>
    %28 = vector.shape_cast %27 : vector<8x16x12xf32> to vector<128x12xf32>
    %c2 = arith.constant 2 : index
    %c0_20 = arith.constant 0 : index
    %c0_21 = arith.constant 0 : index
    %29 = vector.load %arg5[%c2, %c0_20, %c0_21] : memref<3x12x8xf32, #tpu.memory_space<vmem>>, vector<1x12x8xf32>
    %30 = vector.shape_cast %29 : vector<1x12x8xf32> to vector<12x8xf32>
    %cst_22 = arith.constant dense<0.000000e+00> : vector<128x8xf32>
    %31 = tpu.matmul %28, %30, %cst_22 {dimension_numbers = #tpu.dot_dimension_numbers<[1], [0], [0], [1], [0, 0, 1, 1], [], []>} : vector<128x12xf32>, vector<12x8xf32>, vector<128x8xf32> -> vector<128x8xf32>
    %32 = arith.addf %26, %31 : vector<128x8xf32>
    %cst_23 = arith.constant dense<0.000000e+00> : vector<8xf32>
    %33 = vector.multi_reduction <add>, %32, %cst_23 [0] : vector<128x8xf32> to vector<8xf32>
    %34 = vector.shape_cast %33 : vector<8xf32> to vector<1x8xf32>
    %35 = arith.mulf %32, %32 : vector<128x8xf32>
    %cst_24 = arith.constant dense<0.000000e+00> : vector<8xf32>
    %36 = vector.multi_reduction <add>, %35, %cst_24 [0] : vector<128x8xf32> to vector<8xf32>
    %37 = vector.shape_cast %36 : vector<8xf32> to vector<1x8xf32>
    %38 = tpu.concatenate %34, %37 in 0 : vector<1x8xf32>, vector<1x8xf32> -> vector<2x8xf32>
    %c0_25 = arith.constant 0 : index
    %c0_26 = arith.constant 0 : index
    %c0_27 = arith.constant 0 : index
    %c0_28 = arith.constant 0 : index
    %39 = vector.load %arg8[%c0_25, %c0_26, %c0_27, %c0_28] : memref<1x1x2x8xf32, #tpu.memory_space<vmem>>, vector<1x1x2x8xf32>
    %40 = vector.shape_cast %39 : vector<1x1x2x8xf32> to vector<2x8xf32>
    %41 = vector.shape_cast %38 : vector<2x8xf32> to vector<1x1x2x8xf32>
    tpu.vector_store %arg8[%c0_25, %c0_26, %c0_27, %c0_28], %41 {strides = array<i32>} : memref<1x1x2x8xf32, #tpu.memory_space<vmem>>, vector<1x1x2x8xf32>,
    %42 = vector.shape_cast %32 : vector<128x8xf32> to vector<8x16x8xf32>
    %c0_29 = arith.constant 0 : index
    %c0_30 = arith.constant 0 : index
    %c0_31 = arith.constant 0 : index
    %c0_32 = arith.constant 0 : index
    %43 = vector.load %arg7[%c0_29, %c0_30, %c0_31, %c0_32] : memref<1x8x16x8xf32, #tpu.memory_space<vmem>>, vector<1x8x16x8xf32>
    %44 = vector.shape_cast %43 : vector<1x8x16x8xf32> to vector<8x16x8xf32>
    %45 = vector.shape_cast %42 : vector<8x16x8xf32> to vector<1x8x16x8xf32>
    tpu.vector_store %arg7[%c0_29, %c0_30, %c0_31, %c0_32], %45 {strides = array<i32>} : memref<1x8x16x8xf32, #tpu.memory_space<vmem>>, vector<1x8x16x8xf32>,
    return
  }
  func.func @transform_0(%arg0: i32, %arg1: i32) -> (i32, i32, i32, i32) {
    %c0_i32 = arith.constant 0 : i32
    %c0_i32_0 = arith.constant 0 : i32
    %c0_i32_1 = arith.constant 0 : i32
    return %arg0, %arg1, %c0_i32, %c0_i32_0 : i32, i32, i32, i32
  }
  func.func @transform_1(%arg0: i32, %arg1: i32) -> (i32, i32, i32, i32) {
    %c0_i32 = arith.constant 0 : i32
    %c0_i32_0 = arith.constant 0 : i32
    %c0_i32_1 = arith.constant 0 : i32
    return %arg0, %arg1, %c0_i32, %c0_i32_0 : i32, i32, i32, i32
  }
  func.func @transform_2(%arg0: i32, %arg1: i32) -> (i32, i32, i32, i32) {
    %c0_i32 = arith.constant 0 : i32
    %c0_i32_0 = arith.constant 0 : i32
    %c0_i32_1 = arith.constant 0 : i32
    return %arg0, %arg1, %c0_i32, %c0_i32_0 : i32, i32, i32, i32
  }
  func.func @transform_3(%arg0: i32, %arg1: i32) -> (i32, i32, i32) {
    %c0_i32 = arith.constant 0 : i32
    %c0_i32_0 = arith.constant 0 : i32
    %c0_i32_1 = arith.constant 0 : i32
    %c0_i32_2 = arith.constant 0 : i32
    return %c0_i32, %c0_i32_0, %c0_i32_1 : i32, i32, i32
  }
  func.func @transform_4(%arg0: i32, %arg1: i32) -> (i32, i32) {
    %c0_i32 = arith.constant 0 : i32
    %c0_i32_0 = arith.constant 0 : i32
    %c0_i32_1 = arith.constant 0 : i32
    return %c0_i32, %c0_i32_0 : i32, i32
  }
  func.func @transform_5(%arg0: i32, %arg1: i32) -> (i32, i32, i32, i32) {
    %c0_i32 = arith.constant 0 : i32
    %c0_i32_0 = arith.constant 0 : i32
    %c0_i32_1 = arith.constant 0 : i32
    return %arg0, %arg1, %c0_i32, %c0_i32_0 : i32, i32, i32, i32
  }
  func.func @transform_6(%arg0: i32, %arg1: i32) -> (i32, i32, i32, i32) {
    %c0_i32 = arith.constant 0 : i32
    %c0_i32_0 = arith.constant 0 : i32
    %c0_i32_1 = arith.constant 0 : i32
    return %arg0, %arg1, %c0_i32, %c0_i32_0 : i32, i32, i32, i32
  }
}

</mosaic_0001>

<llo_original>
// kernel: tpu_custom_call.1
$region0: #{tpu_custom_call.1}
  #allocation0 [shape = 'u32[]', space=smem, size = 0x4, offset = 0x4, fixed_abs, tag = 'smem constant byte address 0x4 - core index']
  #allocation1 [shape = 'u32[144,128]{1,0:T(1,128)}', space=vmem, size = 0x12000, scoped, tag = 'internal scratch']
  %s0 = inlined_call_operand.vmem [shape: f32[2,16,16,4], index: 0, kind: input, shape index: {}]
  %s1 = inlined_call_operand.vmem [shape: f32[2,2,16,4], index: 1, kind: input, shape index: {}]
  %s2 = inlined_call_operand.vmem [shape: f32[2,2,16,4], index: 2, kind: input, shape index: {}]
  %s3 = inlined_call_operand.vmem [shape: f32[3,12,8], index: 3, kind: input, shape index: {}]
  %s4 = inlined_call_operand.vmem [shape: f32[1,8], index: 4, kind: input, shape index: {}]
  %s5 = inlined_call_operand.vmem [shape: f32[2,16,16,8], index: 5, kind: output, shape index: {0}]
  %s6 = inlined_call_operand.hbm [shape: f32[2,2,2,8], index: 6, kind: output, shape index: {1}]
  %7 = xla_tuple %s5, %s6
  %s8 = sld [smem:[#allocation0]]
  $region61: #{tpu_custom_call.1} parent=0
    _
  %s10 = ssub.s32 1, %s8
  %s11 = scalar_select 0, %s10, %s8
  $region1: #{tpu_custom_call.1} parent=0
    #allocation2 [shape = 'u8[2048]{0}', space=vmem, size = 0x800, scoped, tag = 'output window, operand 1']
    #allocation3 [shape = 's32[2]{0}', space=sflag, size = 0x8, scoped, tag = 'scoped memory for tpu_custom_call.1']
    %12 = vsyncpa [#allocation3], 0
    %s13 = scalar_lea.sflag [#allocation3], 1
    %14 = vsyncpa %s13, 0
    loop: start=0, step=1, limit=6
    $region2: #{tpu_custom_call.1} parent=1 // loop_pre_header
      _
    $region3: #{tpu_custom_call.1} parent=1 // loop_header
      %s16 = sphi 0, %s20
      %p17 = scmp.ge.s32.totalorder %s16, 6
      %s23 = sphi 0, %s35
      %s24 = sphi 0, %s31
      %s25 = sphi 0, %s23
      %s26 = sphi 0, %s24
      %s27 = sphi 0, %s25
      %s28 = sphi 0, %s26
      %s40 = sphi 0, %s42
      %s43 = sphi 0, %s40
      %s44 = sphi 0, %s43
      %s60 = sphi 0, %s44
      %s68 = sphi 0, %s70
      %s71 = sphi 0, %s68
      %s72 = sphi 0, %s71
      %s88 = sphi 0, %s72
      %s96 = sphi 0, %s98
      %s99 = sphi 0, %s96
      %s100 = sphi 0, %s99
      %s116 = sphi 0, %s100
      %s120 = sphi 0, %s120
      %s122 = sphi 0, %s120
      %s123 = sphi 0, %s122
      %s137 = sphi 0, %s123
      %s141 = sphi 0, %s141
      %s143 = sphi 0, %s141
      %s144 = sphi 0, %s143
      %s158 = sphi 0, %s144
      %s166 = sphi 0, %s168
      %s169 = sphi 0, %s166
      %s170 = sphi 0, %s169
      %s186 = sphi 0, %s170
      %s194 = sphi 0, %s196
      %s197 = sphi 0, %s194
      %s198 = sphi 0, %s197
      %s214 = sphi 0, %s198
    $region4: #{tpu_custom_call.1} parent=1 // loop_header_branch
      %19 = sbr.rel (%p17) target = $region8
    $region5: #{tpu_custom_call.1} parent=1 // loop_body
      %s21 = ssub.s32 %s16, 1
      %s22 = ssub.s32 %s16, 2
      %s29 = sadd.s32 1, %s24
      %p30 = scmp.ge.s32.totalorder %s29, 2
      %s31 = scalar_select %p30, 0, %s29
      %s32 = sadd.s32 1, %s23
      %s33 = scalar_select %p30, %s32, %s23
      %p34 = scmp.ge.s32.totalorder %s33, 2
      %s35 = scalar_select %p34, 0, %s33
      %s36 = ssub.s32 %s23, %s35
      %s37 = ssub.s32 %s24, %s31
      %s38 = sor.u32 %s36, %s37
      %p39 = scmp.eq.s32.totalorder %s38, 0
      %s41 = sadd.s32 %s40, 1
      %s42 = scalar_select %p39, %s40, %s41
      %p45 = pneg %p39
      %p46 = scmp.eq.s32.totalorder %s16, 3
      %p47 = por %p45, %p46
      %p48 = scmp.ne.s32.totalorder %s40, %s43
      %p49 = scmp.eq.s32.totalorder %s16, 0
      %p50 = por %p48, %p49
      %p51 = scmp.ne.s32.totalorder %s40, %s43
      %p52 = scmp.eq.s32.totalorder %s21, 3
      %p53 = por %p51, %p52
      %p54 = scmp.ne.s32.totalorder %s43, %s44
      %p55 = scmp.eq.s32.totalorder %s21, 0
      %p56 = por %p54, %p55
      %p57 = scmp.ne.s32.totalorder %s43, %s44
      %p58 = scmp.eq.s32.totalorder %s22, 3
      %p59 = por %p57, %p58
      %p61 = scmp.ne.s32.totalorder %s44, %s60
      %p62 = scmp.eq.s32.totalorder %s22, 0
      %p63 = por %p61, %p62
      %s64 = ssub.s32 %s23, %s35
      %s65 = ssub.s32 %s24, %s31
      %s66 = sor.u32 %s64, %s65
      %p67 = scmp.eq.s32.totalorder %s66, 0
      %s69 = sadd.s32 %s68, 1
      %s70 = scalar_select %p67, %s68, %s69
      %p73 = pneg %p67
      %p74 = scmp.eq.s32.totalorder %s16, 3
      %p75 = por %p73, %p74
      %p76 = scmp.ne.s32.totalorder %s68, %s71
      %p77 = scmp.eq.s32.totalorder %s16, 0
      %p78 = por %p76, %p77
      %p79 = scmp.ne.s32.totalorder %s68, %s71
      %p80 = scmp.eq.s32.totalorder %s21, 3
      %p81 = por %p79, %p80
      %p82 = scmp.ne.s32.totalorder %s71, %s72
      %p83 = scmp.eq.s32.totalorder %s21, 0
      %p84 = por %p82, %p83
      %p85 = scmp.ne.s32.totalorder %s71, %s72
      %p86 = scmp.eq.s32.totalorder %s22, 3
      %p87 = por %p85, %p86
      %p89 = scmp.ne.s32.totalorder %s72, %s88
      %p90 = scmp.eq.s32.totalorder %s22, 0
      %p91 = por %p89, %p90
      %s92 = ssub.s32 %s23, %s35
      %s93 = ssub.s32 %s24, %s31
      %s94 = sor.u32 %s92, %s93
      %p95 = scmp.eq.s32.totalorder %s94, 0
      %s97 = sadd.s32 %s96, 1
      %s98 = scalar_select %p95, %s96, %s97
      %p101 = pneg %p95
      %p102 = scmp.eq.s32.totalorder %s16, 3
      %p103 = por %p101, %p102
      %p104 = scmp.ne.s32.totalorder %s96, %s99
      %p105 = scmp.eq.s32.totalorder %s16, 0
      %p106 = por %p104, %p105
      %p107 = scmp.ne.s32.totalorder %s96, %s99
      %p108 = scmp.eq.s32.totalorder %s21, 3
      %p109 = por %p107, %p108
      %p110 = scmp.ne.s32.totalorder %s99, %s100
      %p111 = scmp.eq.s32.totalorder %s21, 0
      %p112 = por %p110, %p111
      %p113 = scmp.ne.s32.totalorder %s99, %s100
      %p114 = scmp.eq.s32.totalorder %s22, 3
      %p115 = por %p113, %p114
      %p117 = scmp.ne.s32.totalorder %s100, %s116
      %p118 = scmp.eq.s32.totalorder %s22, 0
      %p119 = por %p117, %p118
      %s121 = sadd.s32 %s120, 1
      %p124 = scmp.eq.s32.totalorder %s16, 3
      %p125 = scmp.ne.s32.totalorder %s120, %s122
      %p126 = scmp.eq.s32.totalorder %s16, 0
      %p127 = por %p125, %p126
      %p128 = scmp.ne.s32.totalorder %s120, %s122
      %p129 = scmp.eq.s32.totalorder %s21, 3
      %p130 = por %p128, %p129
      %p131 = scmp.ne.s32.totalorder %s122, %s123
      %p132 = scmp.eq.s32.totalorder %s21, 0
      %p133 = por %p131, %p132
      %p134 = scmp.ne.s32.totalorder %s122, %s123
      %p135 = scmp.eq.s32.totalorder %s22, 3
      %p136 = por %p134, %p135
      %p138 = scmp.ne.s32.totalorder %s123, %s137
      %p139 = scmp.eq.s32.totalorder %s22, 0
      %p140 = por %p138, %p139
      %s142 = sadd.s32 %s141, 1
      %p145 = scmp.eq.s32.totalorder %s16, 3
      %p146 = scmp.ne.s32.totalorder %s141, %s143
      %p147 = scmp.eq.s32.totalorder %s16, 0
      %p148 = por %p146, %p147
      %p149 = scmp.ne.s32.totalorder %s141, %s143
      %p150 = scmp.eq.s32.totalorder %s21, 3
      %p151 = por %p149, %p150
      %p152 = scmp.ne.s32.totalorder %s143, %s144
      %p153 = scmp.eq.s32.totalorder %s21, 0
      %p154 = por %p152, %p153
      %p155 = scmp.ne.s32.totalorder %s143, %s144
      %p156 = scmp.eq.s32.totalorder %s22, 3
      %p157 = por %p155, %p156
      %p159 = scmp.ne.s32.totalorder %s144, %s158
      %p160 = scmp.eq.s32.totalorder %s22, 0
      %p161 = por %p159, %p160
      %s162 = ssub.s32 %s23, %s35
      %s163 = ssub.s32 %s24, %s31
      %s164 = sor.u32 %s162, %s163
      %p165 = scmp.eq.s32.totalorder %s164, 0
      %s167 = sadd.s32 %s166, 1
      %s168 = scalar_select %p165, %s166, %s167
      %p171 = pneg %p165
      %p172 = scmp.eq.s32.totalorder %s16, 3
      %p173 = por %p171, %p172
      %p174 = scmp.ne.s32.totalorder %s166, %s169
      %p175 = scmp.eq.s32.totalorder %s16, 0
      %p176 = por %p174, %p175
      %p177 = scmp.ne.s32.totalorder %s166, %s169
      %p178 = scmp.eq.s32.totalorder %s21, 3
      %p179 = por %p177, %p178
      %p180 = scmp.ne.s32.totalorder %s169, %s170
      %p181 = scmp.eq.s32.totalorder %s21, 0
      %p182 = por %p180, %p181
      %p183 = scmp.ne.s32.totalorder %s169, %s170
      %p184 = scmp.eq.s32.totalorder %s22, 3
      %p185 = por %p183, %p184
      %p187 = scmp.ne.s32.totalorder %s170, %s186
      %p188 = scmp.eq.s32.totalorder %s22, 0
      %p189 = por %p187, %p188
      %s190 = ssub.s32 %s23, %s35
      %s191 = ssub.s32 %s24, %s31
      %s192 = sor.u32 %s190, %s191
      %p193 = scmp.eq.s32.totalorder %s192, 0
      %s195 = sadd.s32 %s194, 1
      %s196 = scalar_select %p193, %s194, %s195
      %p199 = pneg %p193
      %p200 = scmp.eq.s32.totalorder %s16, 3
      %p201 = por %p199, %p200
      %p202 = scmp.ne.s32.totalorder %s194, %s197
      %p203 = scmp.eq.s32.totalorder %s16, 0
      %p204 = por %p202, %p203
      %p205 = scmp.ne.s32.totalorder %s194, %s197
      %p206 = scmp.eq.s32.totalorder %s21, 3
      %p207 = por %p205, %p206
      %p208 = scmp.ne.s32.totalorder %s197, %s198
      %p209 = scmp.eq.s32.totalorder %s21, 0
      %p210 = por %p208, %p209
      %p211 = scmp.ne.s32.totalorder %s197, %s198
      %p212 = scmp.eq.s32.totalorder %s22, 3
      %p213 = por %p211, %p212
      %p215 = scmp.ne.s32.totalorder %s198, %s214
      %p216 = scmp.eq.s32.totalorder %s22, 0
      %p217 = por %p215, %p216
      %p218 = scmp.le.s32.totalorder 1, %s16
      %p219 = scmp.lt.s32.totalorder %s16, 5
      %p220 = pnand %p218, %p219
      %p221 = pneg %p220
      // Predicated region
      $region9: #{tpu_custom_call.1} parent=5 // pred_check
        _
      $region10: #{tpu_custom_call.1} parent=5 // pred_check_branch
        %223 = sbr.rel (%p220) target = $region12
      $region11: #{tpu_custom_call.1} parent=5 // pred_region
        %s224 = ssub.s32 %s16, 1
        // Predicated region
        $region13: #{tpu_custom_call.1} parent=11 // pred_check
          %p225 = pneg %p133
        $region14: #{tpu_custom_call.1} parent=11 // pred_check_branch
          %227 = sbr.rel (%p225) target = $region16
        $region15: #{tpu_custom_call.1} parent=11 // pred_region
          _
        $region16: #{tpu_custom_call.1} parent=11 // pred_fallthru
          _
        // Predicated region
        $region17: #{tpu_custom_call.1} parent=11 // pred_check
          %p228 = pneg %p154
        $region18: #{tpu_custom_call.1} parent=11 // pred_check_branch
          %230 = sbr.rel (%p228) target = $region20
        $region19: #{tpu_custom_call.1} parent=11 // pred_region
          _
        $region20: #{tpu_custom_call.1} parent=11 // pred_fallthru
          _
      $region12: #{tpu_custom_call.1} parent=5 // pred_fallthru
        _
      %p231 = scmp.lt.s32.totalorder %s16, 4
      // Predicated region
      $region21: #{tpu_custom_call.1} parent=5 // pred_check
        %p232 = pneg %p231
      $region22: #{tpu_custom_call.1} parent=5 // pred_check_branch
        %234 = sbr.rel (%p232) target = $region24
      $region23: #{tpu_custom_call.1} parent=5 // pred_region
        // Predicated region
        $region25: #{tpu_custom_call.1} parent=23 // pred_check
          %p235 = pneg %p50
        $region26: #{tpu_custom_call.1} parent=23 // pred_check_branch
          %237 = sbr.rel (%p235) target = $region28
        $region27: #{tpu_custom_call.1} parent=23 // pred_region
          %s238 = smul.u32 8, %s24
          %p239 = scmp.lt.s32.totalorder %s23, 1
          %s240 = scalar_select %p239, %s23, 1
          %p241 = scmp.lt.s32.totalorder %s238, 15
          %s242 = scalar_select %p241, %s238, 15
          %s243 = smul.addr %s242, 2
          %s244 = smul.addr %s240, 32
          %s245 = sadd.s32 %s243, %s244
          %s246 = smul.addr %s245, 8
          %s247 = scalar_lea.vmem %s0, %s246
          %s248 = smul.u32 8, %s24
        $region28: #{tpu_custom_call.1} parent=23 // pred_fallthru
          _
        // Predicated region
        $region29: #{tpu_custom_call.1} parent=23 // pred_check
          %p249 = pneg %p78
        $region30: #{tpu_custom_call.1} parent=23 // pred_check_branch
          %251 = sbr.rel (%p249) target = $region32
        $region31: #{tpu_custom_call.1} parent=23 // pred_region
          %p252 = scmp.lt.s32.totalorder %s23, 1
          %s253 = scalar_select %p252, %s23, 1
          %p254 = scmp.lt.s32.totalorder %s24, 1
          %s255 = scalar_select %p254, %s24, 1
          %s256 = smul.addr %s255, 2
          %s257 = smul.addr %s253, 4
          %s258 = sadd.s32 %s256, %s257
          %s259 = smul.addr %s258, 8
          %s260 = scalar_lea.vmem %s1, %s259
        $region32: #{tpu_custom_call.1} parent=23 // pred_fallthru
          _
        // Predicated region
        $region33: #{tpu_custom_call.1} parent=23 // pred_check
          %p261 = pneg %p106
        $region34: #{tpu_custom_call.1} parent=23 // pred_check_branch
          %263 = sbr.rel (%p261) target = $region36
        $region35: #{tpu_custom_call.1} parent=23 // pred_region
          %p264 = scmp.lt.s32.totalorder %s23, 1
          %s265 = scalar_select %p264, %s23, 1
          %p266 = scmp.lt.s32.totalorder %s24, 1
          %s267 = scalar_select %p266, %s24, 1
          %s268 = smul.addr %s267, 2
          %s269 = smul.addr %s265, 4
          %s270 = sadd.s32 %s268, %s269
          %s271 = smul.addr %s270, 8
          %s272 = scalar_lea.vmem %s2, %s271
        $region36: #{tpu_custom_call.1} parent=23 // pred_fallthru
          _
      $region24: #{tpu_custom_call.1} parent=5 // pred_fallthru
        _
      %p273 = scmp.le.s32.totalorder 1, %s16
      %p274 = scmp.lt.s32.totalorder %s16, 5
      %p275 = pnand %p273, %p274
      %p276 = pneg %p275
      // Predicated region
      $region37: #{tpu_custom_call.1} parent=5 // pred_check
        _
      $region38: #{tpu_custom_call.1} parent=5 // pred_check_branch
        %278 = sbr.rel (%p275) target = $region40
      $region39: #{tpu_custom_call.1} parent=5 // pred_region
        %s279 = ssub.s32 %s16, 1
        %s280 = smul.u32 8, %s26
        %p281 = scmp.lt.s32.totalorder %s25, 1
        %s282 = scalar_select %p281, %s25, 1
        %p283 = scmp.lt.s32.totalorder %s280, 15
        %s284 = scalar_select %p283, %s280, 15
        %s285 = smul.addr %s284, 2
        %s286 = smul.addr %s282, 32
        %s287 = sadd.s32 %s285, %s286
        %s288 = smul.addr %s287, 8
        %s289 = scalar_lea.vmem %s0, %s288
        %p290 = pneg %p56
        %p291 = pneg %p53
        %p292 = scmp.lt.s32.totalorder %s25, 1
        %s293 = scalar_select %p292, %s25, 1
        %p294 = scmp.lt.s32.totalorder %s26, 1
        %s295 = scalar_select %p294, %s26, 1
        %s296 = smul.addr %s295, 2
        %s297 = smul.addr %s293, 4
        %s298 = sadd.s32 %s296, %s297
        %s299 = smul.addr %s298, 8
        %s300 = scalar_lea.vmem %s1, %s299
        %p301 = pneg %p84
        %p302 = pneg %p81
        %p303 = scmp.lt.s32.totalorder %s25, 1
        %s304 = scalar_select %p303, %s25, 1
        %p305 = scmp.lt.s32.totalorder %s26, 1
        %s306 = scalar_select %p305, %s26, 1
        %s307 = smul.addr %s306, 2
        %s308 = smul.addr %s304, 4
        %s309 = sadd.s32 %s307, %s308
        %s310 = smul.addr %s309, 8
        %s311 = scalar_lea.vmem %s2, %s310
        %p312 = pneg %p112
        %p313 = pneg %p109
        %p314 = pneg %p133
        %p315 = pneg %p130
        %p316 = pneg %p154
        %p317 = pneg %p151
        %p318 = pneg %p182
        %p319 = pneg %p179
        %s320 = smul.u32 8, %s26
        %p321 = scmp.lt.s32.totalorder %s25, 1
        %s322 = scalar_select %p321, %s25, 1
        %p323 = scmp.lt.s32.totalorder %s320, 15
        %s324 = scalar_select %p323, %s320, 15
        %s325 = smul.addr %s324, 2
        %s326 = smul.addr %s322, 32
        %s327 = sadd.s32 %s325, %s326
        %s328 = smul.addr %s327, 8
        %s329 = scalar_lea.vmem %s5, %s328
        %p330 = pneg %p210
        %p331 = pneg %p207
        %s332 = sand.u32 %s197, 1
        %s333 = scalar_lea.sflag [#allocation3], %s332
        %s334 = sand.u32 %s197, 1
        %s335 = smul.addr %s334, 2
        %s336 = scalar_lea.vmem [#allocation2], %s335
        %s337 = smul.u32 8, %s26
        %p338 = scmp.lt.s32.totalorder %s25, 1
        %s339 = scalar_select %p338, %s25, 1
        %p340 = scmp.lt.s32.totalorder %s337, 15
        %s341 = scalar_select %p340, %s337, 15
        %s342 = smul.addr %s341, 2
        %s343 = smul.addr %s339, 32
        %s344 = sadd.s32 %s342, %s343
        %s345 = smul.addr %s344, 8
        %s346 = scalar_lea.vmem %s0, %s345
        %s347 = smul.u32 8, %s26
        %p348 = scmp.lt.s32.totalorder %s25, 1
        %s349 = scalar_select %p348, %s25, 1
        %p350 = scmp.lt.s32.totalorder %s26, 1
        %s351 = scalar_select %p350, %s26, 1
        %s352 = smul.addr %s351, 2
        %s353 = smul.addr %s349, 4
        %s354 = sadd.s32 %s352, %s353
        %s355 = smul.addr %s354, 8
        %s356 = scalar_lea.vmem %s1, %s355
        %p357 = scmp.lt.s32.totalorder %s25, 1
        %s358 = scalar_select %p357, %s25, 1
        %p359 = scmp.lt.s32.totalorder %s26, 1
        %s360 = scalar_select %p359, %s26, 1
        %s361 = smul.addr %s360, 2
        %s362 = smul.addr %s358, 4
        %s363 = sadd.s32 %s361, %s362
        %s364 = smul.addr %s363, 8
        %s365 = scalar_lea.vmem %s2, %s364
        %s366 = smul.u32 8, %s26
        %p367 = scmp.lt.s32.totalorder %s25, 1
        %s368 = scalar_select %p367, %s25, 1
        %p369 = scmp.lt.s32.totalorder %s366, 15
        %s370 = scalar_select %p369, %s366, 15
        %s371 = smul.addr %s370, 2
        %s372 = smul.addr %s368, 32
        %s373 = sadd.s32 %s371, %s372
        %s374 = smul.addr %s373, 8
        %s375 = scalar_lea.vmem %s5, %s374
        %s376 = smul.u32 8, %s26
        %v377 = vld [vmem:[%s356] sm:$0xff]
        %v378 = vld [vmem:[%s356 + $0x8] sm:$0xff]
        %v379 = vld [vmem:[%s346] sm:$0xff]
        %v380 = vld [vmem:[%s346 + $0x8] sm:$0xff]
        %v381 = vld [vmem:[%s346 + $0x10] sm:$0xff]
        %v382 = vld [vmem:[%s346 + $0x18] sm:$0xff]
        %v383 = vld [vmem:[%s346 + $0x20] sm:$0xff]
        %v384 = vld [vmem:[%s346 + $0x28] sm:$0xff]
        %v385 = vld [vmem:[%s346 + $0x30] sm:$0xff]
        %v386 = vld [vmem:[%s346 + $0x38] sm:$0xff]
        %v387 = vld [vmem:[%s346 + $0x40] sm:$0xff]
        %v388 = vld [vmem:[%s346 + $0x48] sm:$0xff]
        %v389 = vld [vmem:[%s346 + $0x50] sm:$0xff]
        %v390 = vld [vmem:[%s346 + $0x58] sm:$0xff]
        %v391 = vld [vmem:[%s346 + $0x60] sm:$0xff]
        %v392 = vld [vmem:[%s346 + $0x68] sm:$0xff]
        %v393 = vld [vmem:[%s346 + $0x70] sm:$0xff]
        %v394 = vld [vmem:[%s346 + $0x78] sm:$0xff]
        %v395 = vld [vmem:[%s365] sm:$0xff]
        %v396 = vld [vmem:[%s365 + $0x8] sm:$0xff]
        %v397 = vld [vmem:[%s4] sm:$0x1]
        %vm418 = vcmask 1040384
        %v419 = vrot.slane %v377, 7
        %v420 = vrot.slane %v378, 7
        %v421 = vsel %vm418, %v419, %v420
        %v422 = vrot.slane %v379, 7
        %v423 = vrot.slane %v380, 7
        %v424 = vsel %vm418, %v422, %v423
        %v425 = vrot.slane %v381, 7
        %v426 = vrot.slane %v382, 7
        %v427 = vsel %vm418, %v425, %v426
        %v428 = vrot.slane %v383, 7
        %v429 = vrot.slane %v384, 7
        %v430 = vsel %vm418, %v428, %v429
        %v431 = vrot.slane %v385, 7
        %v432 = vrot.slane %v386, 7
        %v433 = vsel %vm418, %v431, %v432
        %v434 = vrot.slane %v387, 7
        %v435 = vrot.slane %v388, 7
        %v436 = vsel %vm418, %v434, %v435
        %v437 = vrot.slane %v389, 7
        %v438 = vrot.slane %v390, 7
        %v439 = vsel %vm418, %v437, %v438
        %v440 = vrot.slane %v391, 7
        %v441 = vrot.slane %v392, 7
        %v442 = vsel %vm418, %v440, %v441
        %v443 = vrot.slane %v393, 7
        %v444 = vrot.slane %v394, 7
        %v445 = vsel %vm418, %v443, %v444
        %v446 = vrot.slane %v395, 7
        %v447 = vrot.slane %v396, 7
        %v448 = vsel %vm418, %v446, %v447
        %v469 = vsel %vm418, 0.0, %v419
        %v470 = vsel %vm418, 0.0, %v422
        %v471 = vsel %vm418, 0.0, %v425
        %v472 = vsel %vm418, 0.0, %v428
        %v473 = vsel %vm418, 0.0, %v431
        %v474 = vsel %vm418, 0.0, %v434
        %v475 = vsel %vm418, 0.0, %v437
        %v476 = vsel %vm418, 0.0, %v440
        %v477 = vsel %vm418, 0.0, %v443
        %v478 = vsel %vm418, 0.0, %v446
        %vm479 = vcmask 1046528
        %v480 = vrot.slane %v377, 1
        %v481 = vrot.slane %v378, 1
        %v482 = vsel %vm479, %v480, %v481
        %v483 = vrot.slane %v379, 1
        %v484 = vrot.slane %v380, 1
        %v485 = vsel %vm479, %v483, %v484
        %v486 = vrot.slane %v381, 1
        %v487 = vrot.slane %v382, 1
        %v488 = vsel %vm479, %v486, %v487
        %v489 = vrot.slane %v383, 1
        %v490 = vrot.slane %v384, 1
        %v491 = vsel %vm479, %v489, %v490
        %v492 = vrot.slane %v385, 1
        %v493 = vrot.slane %v386, 1
        %v494 = vsel %vm479, %v492, %v493
        %v495 = vrot.slane %v387, 1
        %v496 = vrot.slane %v388, 1
        %v497 = vsel %vm479, %v495, %v496
        %v498 = vrot.slane %v389, 1
        %v499 = vrot.slane %v390, 1
        %v500 = vsel %vm479, %v498, %v499
        %v501 = vrot.slane %v391, 1
        %v502 = vrot.slane %v392, 1
        %v503 = vsel %vm479, %v501, %v502
        %v504 = vrot.slane %v393, 1
        %v505 = vrot.slane %v394, 1
        %v506 = vsel %vm479, %v504, %v505
        %v507 = vrot.slane %v395, 1
        %v508 = vrot.slane %v396, 1
        %v509 = vsel %vm479, %v507, %v508
        %v520 = vsel %vm479, %v481, 0.0
        %v521 = vsel %vm479, %v484, 0.0
        %v522 = vsel %vm479, %v487, 0.0
        %v523 = vsel %vm479, %v490, 0.0
        %v524 = vsel %vm479, %v493, 0.0
        %v525 = vsel %vm479, %v496, 0.0
        %v526 = vsel %vm479, %v499, 0.0
        %v527 = vsel %vm479, %v502, 0.0
        %v528 = vsel %vm479, %v505, 0.0
        %v529 = vsel %vm479, %v508, 0.0
        %530 = vrot.lane.b32.xlu0 %v377, 4
        %v531 = vpop.permute.xlu0 %530
        %532 = vrot.lane.b32.xlu0 %v378, 4
        %v533 = vpop.permute.xlu0 %532
        %534 = vrot.lane.b32.xlu0 %v379, 4
        %v535 = vpop.permute.xlu0 %534
        %536 = vrot.lane.b32.xlu0 %v380, 4
        %v537 = vpop.permute.xlu0 %536
        %538 = vrot.lane.b32.xlu0 %v381, 4
        %v539 = vpop.permute.xlu0 %538
        %540 = vrot.lane.b32.xlu0 %v382, 4
        %v541 = vpop.permute.xlu0 %540
        %542 = vrot.lane.b32.xlu0 %v383, 4
        %v543 = vpop.permute.xlu0 %542
        %544 = vrot.lane.b32.xlu0 %v384, 4
        %v545 = vpop.permute.xlu0 %544
        %546 = vrot.lane.b32.xlu0 %v385, 4
        %v547 = vpop.permute.xlu0 %546
        %548 = vrot.lane.b32.xlu0 %v386, 4
        %v549 = vpop.permute.xlu0 %548
        %550 = vrot.lane.b32.xlu0 %v387, 4
        %v551 = vpop.permute.xlu0 %550
        %552 = vrot.lane.b32.xlu0 %v388, 4
        %v553 = vpop.permute.xlu0 %552
        %554 = vrot.lane.b32.xlu0 %v389, 4
        %v555 = vpop.permute.xlu0 %554
        %556 = vrot.lane.b32.xlu0 %v390, 4
        %v557 = vpop.permute.xlu0 %556
        %558 = vrot.lane.b32.xlu0 %v391, 4
        %v559 = vpop.permute.xlu0 %558
        %560 = vrot.lane.b32.xlu0 %v392, 4
        %v561 = vpop.permute.xlu0 %560
        %562 = vrot.lane.b32.xlu0 %v393, 4
        %v563 = vpop.permute.xlu0 %562
        %564 = vrot.lane.b32.xlu0 %v394, 4
        %v565 = vpop.permute.xlu0 %564
        %566 = vrot.lane.b32.xlu0 %v395, 4
        %v567 = vpop.permute.xlu0 %566
        %568 = vrot.lane.b32.xlu0 %v396, 4
        %v569 = vpop.permute.xlu0 %568
        %600 = vrot.lane.b32.xlu0 %v482, 8
        %v601 = vpop.permute.xlu0 %600
        %602 = vrot.lane.b32.xlu0 %v520, 8
        %v603 = vpop.permute.xlu0 %602
        %604 = vrot.lane.b32.xlu0 %v485, 8
        %v605 = vpop.permute.xlu0 %604
        %606 = vrot.lane.b32.xlu0 %v521, 8
        %v607 = vpop.permute.xlu0 %606
        %608 = vrot.lane.b32.xlu0 %v488, 8
        %v609 = vpop.permute.xlu0 %608
        %610 = vrot.lane.b32.xlu0 %v522, 8
        %v611 = vpop.permute.xlu0 %610
        %612 = vrot.lane.b32.xlu0 %v491, 8
        %v613 = vpop.permute.xlu0 %612
        %614 = vrot.lane.b32.xlu0 %v523, 8
        %v615 = vpop.permute.xlu0 %614
        %616 = vrot.lane.b32.xlu0 %v494, 8
        %v617 = vpop.permute.xlu0 %616
        %618 = vrot.lane.b32.xlu0 %v524, 8
        %v619 = vpop.permute.xlu0 %618
        %620 = vrot.lane.b32.xlu0 %v497, 8
        %v621 = vpop.permute.xlu0 %620
        %622 = vrot.lane.b32.xlu0 %v525, 8
        %v623 = vpop.permute.xlu0 %622
        %624 = vrot.lane.b32.xlu0 %v500, 8
        %v625 = vpop.permute.xlu0 %624
        %626 = vrot.lane.b32.xlu0 %v526, 8
        %v627 = vpop.permute.xlu0 %626
        %628 = vrot.lane.b32.xlu0 %v503, 8
        %v629 = vpop.permute.xlu0 %628
        %630 = vrot.lane.b32.xlu0 %v527, 8
        %v631 = vpop.permute.xlu0 %630
        %632 = vrot.lane.b32.xlu0 %v506, 8
        %v633 = vpop.permute.xlu0 %632
        %634 = vrot.lane.b32.xlu0 %v528, 8
        %v635 = vpop.permute.xlu0 %634
        %636 = vrot.lane.b32.xlu0 %v509, 8
        %v637 = vpop.permute.xlu0 %636
        %638 = vrot.lane.b32.xlu0 %v529, 8
        %v639 = vpop.permute.xlu0 %638
        %vm660 = vcmask 31744
        %v661 = vsel %vm660, %v469, %v531
        %v662 = vsel %vm660, %v421, %v533
        %v663 = vsel %vm660, %v470, %v535
        %v664 = vsel %vm660, %v424, %v537
        %v665 = vsel %vm660, %v471, %v539
        %v666 = vsel %vm660, %v427, %v541
        %v667 = vsel %vm660, %v472, %v543
        %v668 = vsel %vm660, %v430, %v545
        %v669 = vsel %vm660, %v473, %v547
        %v670 = vsel %vm660, %v433, %v549
        %v671 = vsel %vm660, %v474, %v551
        %v672 = vsel %vm660, %v436, %v553
        %v673 = vsel %vm660, %v475, %v555
        %v674 = vsel %vm660, %v439, %v557
        %v675 = vsel %vm660, %v476, %v559
        %v676 = vsel %vm660, %v442, %v561
        %v677 = vsel %vm660, %v477, %v563
        %v678 = vsel %vm660, %v445, %v565
        %v679 = vsel %vm660, %v478, %v567
        %v680 = vsel %vm660, %v448, %v569
        %vm681 = vcmask 64512
        %v682 = vsel %vm681, %v661, %v601
        %v683 = vsel %vm681, %v662, %v603
        %v684 = vsel %vm681, %v663, %v605
        %v685 = vsel %vm681, %v664, %v607
        %v686 = vsel %vm681, %v665, %v609
        %v687 = vsel %vm681, %v666, %v611
        %v688 = vsel %vm681, %v667, %v613
        %v689 = vsel %vm681, %v668, %v615
        %v690 = vsel %vm681, %v669, %v617
        %v691 = vsel %vm681, %v670, %v619
        %v692 = vsel %vm681, %v671, %v621
        %v693 = vsel %vm681, %v672, %v623
        %v694 = vsel %vm681, %v673, %v625
        %v695 = vsel %vm681, %v674, %v627
        %v696 = vsel %vm681, %v675, %v629
        %v697 = vsel %vm681, %v676, %v631
        %v698 = vsel %vm681, %v677, %v633
        %v699 = vsel %vm681, %v678, %v635
        %v700 = vsel %vm681, %v679, %v637
        %v701 = vsel %vm681, %v680, %v639
        %v702 = vld [vmem:[%s3] sm:$0xff]
        %v703 = vld [vmem:[%s3 + $0x8] sm:$0xf]
        %v705 = vlaneseq
        %v706 = vshrl.u32 %v705, 7
        %v707 = vsub.s32 0, %v706
        %v708 = vrot.slane %v397, %v707
        %vm710 = vcmask 97280
        %v712 = vsel %vm710, %v682, 0
        %v715 = vsel %vm710, %v683, 0
        %v718 = vsel %vm710, %v684, 0
        %v721 = vsel %vm710, %v685, 0
        %v724 = vsel %vm710, %v686, 0
        %v727 = vsel %vm710, %v687, 0
        %v730 = vsel %vm710, %v688, 0
        %v733 = vsel %vm710, %v689, 0
        %v736 = vsel %vm710, %v690, 0
        %v739 = vsel %vm710, %v691, 0
        %v742 = vsel %vm710, %v692, 0
        %v745 = vsel %vm710, %v693, 0
        %v748 = vsel %vm710, %v694, 0
        %v751 = vsel %vm710, %v695, 0
        %v754 = vsel %vm710, %v696, 0
        %v757 = vsel %vm710, %v697, 0
        %vm759 = vcmask 1043456
        %v761 = vsel %vm759, %v703, 0
        %763 = vmatprep.subr.mxu0 0.0
        %764 = vmatpush1.msra.mxu0 %v702
        %765 = vmatprep.subr.mxu0 0.0
        %766 = vmatpush1.msra.mxu0 %v761
        %767 = vmatprep.subr.mxu0 0.0
        %768 = vmatpush1.msra.mxu0 0.0
        %769 = vmatprep.subr.mxu0 0.0
        %770 = vmatpush1.msra.mxu0 0.0
        %771 = vmatprep.subr.mxu0 0.0
        %772 = vmatpush1.msra.mxu0 0.0
        %773 = vmatprep.subr.mxu0 0.0
        %774 = vmatpush1.msra.mxu0 0.0
        %775 = vmatprep.subr.mxu0 0.0
        %776 = vmatpush1.msra.mxu0 0.0
        %777 = vmatprep.subr.mxu0 0.0
        %778 = vmatpush1.msra.mxu0 0.0
        %779 = vmatprep.subr.mxu0 0.0
        %780 = vmatpush1.msra.mxu0 0.0
        %781 = vmatprep.subr.mxu0 0.0
        %782 = vmatpush1.msra.mxu0 0.0
        %783 = vmatprep.subr.mxu0 0.0
        %784 = vmatpush1.msra.mxu0 0.0
        %785 = vmatprep.subr.mxu0 0.0
        %786 = vmatpush1.msra.mxu0 0.0
        %787 = vmatprep.subr.mxu0 0.0
        %788 = vmatpush1.msra.mxu0 0.0
        %789 = vmatprep.subr.mxu0 0.0
        %790 = vmatpush1.msra.mxu0 0.0
        %791 = vmatprep.subr.mxu0 0.0
        %792 = vmatpush1.msra.mxu0 0.0
        %793 = vmatprep.subr.mxu0 0.0
        %794 = vmatpush1.msra.mxu0 0.0
        %795 = vmatprep.subr.mxu0 0.0
        %796 = vmatpush1.msra.mxu0 0.0
        %797 = vmatprep.subr.mxu0 0.0
        %798 = vmatpush1.msra.mxu0 0.0
        %799 = vmatprep.subr.mxu0 0.0
        %800 = vmatpush1.msra.mxu0 0.0
        %801 = vmatprep.subr.mxu0 0.0
        %802 = vmatpush1.msra.mxu0 0.0
        %803 = vmatprep.subr.mxu0 0.0
        %804 = vmatpush1.msra.mxu0 0.0
        %805 = vmatprep.subr.mxu0 0.0
        %806 = vmatpush1.msra.mxu0 0.0
        %807 = vmatprep.subr.mxu0 0.0
        %808 = vmatpush1.msra.mxu0 0.0
        %809 = vmatprep.subr.mxu0 0.0
        %810 = vmatpush1.msra.mxu0 0.0
        %811 = vmatprep.subr.mxu0 0.0
        %812 = vmatpush1.msra.mxu0 0.0
        %813 = vmatprep.subr.mxu0 0.0
        %814 = vmatpush1.msra.mxu0 0.0
        %815 = vmatprep.subr.mxu0 0.0
        %816 = vmatpush1.msra.mxu0 0.0
        %817 = vmatprep.subr.mxu0 0.0
        %818 = vmatpush1.msra.mxu0 0.0
        %819 = vmatprep.subr.mxu0 0.0
        %820 = vmatpush1.msra.mxu0 0.0
        %821 = vmatprep.subr.mxu0 0.0
        %822 = vmatpush1.msra.mxu0 0.0
        %823 = vmatprep.subr.mxu0 0.0
        %824 = vmatpush1.msra.mxu0 0.0
        %825 = vmatprep.subr.mxu0 0.0
        %826 = vmatpush1.msra.mxu0 0.0
        %827 = vmatprep.mubr.f32.mxu0 0.0
        %828 = vmatmul.mubr.f32.gmra.mrb[0].mxu0 %v712
        %v829 = vpop.f32.mrb[0].mxu0
        %v830 = vadd.f32 %v708, %v829
        %v831 = vpop.f32.mrb[0].mxu0
        %832 = vmatprep.mubr.f32.mxu0 0.0
        %833 = vmatmul.mubr.f32.gmra.mrb[0].mxu0 %v715
        %v834 = vpop.f32.mrb[0].mxu0
        %v835 = vadd.f32 %v708, %v834
        %v836 = vpop.f32.mrb[0].mxu0
        %837 = vmatprep.mubr.f32.mxu0 0.0
        %838 = vmatmul.mubr.f32.gmra.mrb[0].mxu0 %v718
        %v839 = vpop.f32.mrb[0].mxu0
        %v840 = vadd.f32 %v708, %v839
        %v841 = vpop.f32.mrb[0].mxu0
        %842 = vmatprep.mubr.f32.mxu0 0.0
        %843 = vmatmul.mubr.f32.gmra.mrb[0].mxu0 %v721
        %v844 = vpop.f32.mrb[0].mxu0
        %v845 = vadd.f32 %v708, %v844
        %v846 = vpop.f32.mrb[0].mxu0
        %847 = vmatprep.mubr.f32.mxu0 0.0
        %848 = vmatmul.mubr.f32.gmra.mrb[0].mxu0 %v724
        %v849 = vpop.f32.mrb[0].mxu0
        %v850 = vadd.f32 %v708, %v849
        %v851 = vpop.f32.mrb[0].mxu0
        %852 = vmatprep.mubr.f32.mxu0 0.0
        %853 = vmatmul.mubr.f32.gmra.mrb[0].mxu0 %v727
        %v854 = vpop.f32.mrb[0].mxu0
        %v855 = vadd.f32 %v708, %v854
        %v856 = vpop.f32.mrb[0].mxu0
        %857 = vmatprep.mubr.f32.mxu0 0.0
        %858 = vmatmul.mubr.f32.gmra.mrb[0].mxu0 %v730
        %v859 = vpop.f32.mrb[0].mxu0
        %v860 = vadd.f32 %v708, %v859
        %v861 = vpop.f32.mrb[0].mxu0
        %862 = vmatprep.mubr.f32.mxu0 0.0
        %863 = vmatmul.mubr.f32.gmra.mrb[0].mxu0 %v733
        %v864 = vpop.f32.mrb[0].mxu0
        %v865 = vadd.f32 %v708, %v864
        %v866 = vpop.f32.mrb[0].mxu0
        %867 = vmatprep.mubr.f32.mxu0 0.0
        %868 = vmatmul.mubr.f32.gmra.mrb[0].mxu0 %v736
        %v869 = vpop.f32.mrb[0].mxu0
        %v870 = vadd.f32 %v708, %v869
        %v871 = vpop.f32.mrb[0].mxu0
        %872 = vmatprep.mubr.f32.mxu0 0.0
        %873 = vmatmul.mubr.f32.gmra.mrb[0].mxu0 %v739
        %v874 = vpop.f32.mrb[0].mxu0
        %v875 = vadd.f32 %v708, %v874
        %v876 = vpop.f32.mrb[0].mxu0
        %877 = vmatprep.mubr.f32.mxu0 0.0
        %878 = vmatmul.mubr.f32.gmra.mrb[0].mxu0 %v742
        %v879 = vpop.f32.mrb[0].mxu0
        %v880 = vadd.f32 %v708, %v879
        %v881 = vpop.f32.mrb[0].mxu0
        %882 = vmatprep.mubr.f32.mxu0 0.0
        %883 = vmatmul.mubr.f32.gmra.mrb[0].mxu0 %v745
        %v884 = vpop.f32.mrb[0].mxu0
        %v885 = vadd.f32 %v708, %v884
        %v886 = vpop.f32.mrb[0].mxu0
        %887 = vmatprep.mubr.f32.mxu0 0.0
        %888 = vmatmul.mubr.f32.gmra.mrb[0].mxu0 %v748
        %v889 = vpop.f32.mrb[0].mxu0
        %v890 = vadd.f32 %v708, %v889
        %v891 = vpop.f32.mrb[0].mxu0
        %892 = vmatprep.mubr.f32.mxu0 0.0
        %893 = vmatmul.mubr.f32.gmra.mrb[0].mxu0 %v751
        %v894 = vpop.f32.mrb[0].mxu0
        %v895 = vadd.f32 %v708, %v894
        %v896 = vpop.f32.mrb[0].mxu0
        %897 = vmatprep.mubr.f32.mxu0 0.0
        %898 = vmatmul.mubr.f32.gmra.mrb[0].mxu0 %v754
        %v899 = vpop.f32.mrb[0].mxu0
        %v900 = vadd.f32 %v708, %v899
        %v901 = vpop.f32.mrb[0].mxu0
        %902 = vmatprep.mubr.f32.mxu0 0.0
        %903 = vmatmul.mubr.f32.gmra.mrb[0].mxu0 %v757
        %v904 = vpop.f32.mrb[0].mxu0
        %v905 = vadd.f32 %v708, %v904
        %v906 = vpop.f32.mrb[0].mxu0
        %907 = vdwg.mxu0
        %s908 = scalar_lea.vmem %s3, 16
        %v909 = vld [vmem:[%s908] sm:$0xff]
        %v910 = vld [vmem:[%s908 + $0x8] sm:$0xf]
        %v912 = vsel %vm710, %v698, 0
        %v915 = vsel %vm710, %v699, 0
        %v918 = vsel %vm759, %v910, 0
        %920 = vmatprep.subr.mxu0 0.0
        %921 = vmatpush1.msra.mxu0 %v909
        %922 = vmatprep.subr.mxu0 0.0
        %923 = vmatpush1.msra.mxu0 %v918
        %924 = vmatprep.subr.mxu0 0.0
        %925 = vmatpush1.msra.mxu0 0.0
        %926 = vmatprep.subr.mxu0 0.0
        %927 = vmatpush1.msra.mxu0 0.0
        %928 = vmatprep.subr.mxu0 0.0
        %929 = vmatpush1.msra.mxu0 0.0
        %930 = vmatprep.subr.mxu0 0.0
        %931 = vmatpush1.msra.mxu0 0.0
        %932 = vmatprep.subr.mxu0 0.0
        %933 = vmatpush1.msra.mxu0 0.0
        %934 = vmatprep.subr.mxu0 0.0
        %935 = vmatpush1.msra.mxu0 0.0
        %936 = vmatprep.subr.mxu0 0.0
        %937 = vmatpush1.msra.mxu0 0.0
        %938 = vmatprep.subr.mxu0 0.0
        %939 = vmatpush1.msra.mxu0 0.0
        %940 = vmatprep.subr.mxu0 0.0
        %941 = vmatpush1.msra.mxu0 0.0
        %942 = vmatprep.subr.mxu0 0.0
        %943 = vmatpush1.msra.mxu0 0.0
        %944 = vmatprep.subr.mxu0 0.0
        %945 = vmatpush1.msra.mxu0 0.0
        %946 = vmatprep.subr.mxu0 0.0
        %947 = vmatpush1.msra.mxu0 0.0
        %948 = vmatprep.subr.mxu0 0.0
        %949 = vmatpush1.msra.mxu0 0.0
        %950 = vmatprep.subr.mxu0 0.0
        %951 = vmatpush1.msra.mxu0 0.0
        %952 = vmatprep.subr.mxu0 0.0
        %953 = vmatpush1.msra.mxu0 0.0
        %954 = vmatprep.subr.mxu0 0.0
        %955 = vmatpush1.msra.mxu0 0.0
        %956 = vmatprep.subr.mxu0 0.0
        %957 = vmatpush1.msra.mxu0 0.0
        %958 = vmatprep.subr.mxu0 0.0
        %959 = vmatpush1.msra.mxu0 0.0
        %960 = vmatprep.subr.mxu0 0.0
        %961 = vmatpush1.msra.mxu0 0.0
        %962 = vmatprep.subr.mxu0 0.0
        %963 = vmatpush1.msra.mxu0 0.0
        %964 = vmatprep.subr.mxu0 0.0
        %965 = vmatpush1.msra.mxu0 0.0
        %966 = vmatprep.subr.mxu0 0.0
        %967 = vmatpush1.msra.mxu0 0.0
        %968 = vmatprep.subr.mxu0 0.0
        %969 = vmatpush1.msra.mxu0 0.0
        %970 = vmatprep.subr.mxu0 0.0
        %971 = vmatpush1.msra.mxu0 0.0
        %972 = vmatprep.subr.mxu0 0.0
        %973 = vmatpush1.msra.mxu0 0.0
        %974 = vmatprep.subr.mxu0 0.0
        %975 = vmatpush1.msra.mxu0 0.0
        %976 = vmatprep.subr.mxu0 0.0
        %977 = vmatpush1.msra.mxu0 0.0
        %978 = vmatprep.subr.mxu0 0.0
        %979 = vmatpush1.msra.mxu0 0.0
        %980 = vmatprep.subr.mxu0 0.0
        %981 = vmatpush1.msra.mxu0 0.0
        %982 = vmatprep.subr.mxu0 0.0
        %983 = vmatpush1.msra.mxu0 0.0
        %984 = vmatprep.mubr.f32.mxu0 0.0
        %985 = vmatmul.mubr.f32.gmra.mrb[0].mxu0 %v718
        %v986 = vpop.f32.mrb[0].mxu0
        %v987 = vadd.f32 0.0, %v986
        %v988 = vpop.f32.mrb[0].mxu0
        %989 = vmatprep.mubr.f32.mxu0 0.0
        %990 = vmatmul.mubr.f32.gmra.mrb[0].mxu0 %v721
        %v991 = vpop.f32.mrb[0].mxu0
        %v992 = vadd.f32 0.0, %v991
        %v993 = vpop.f32.mrb[0].mxu0
        %994 = vmatprep.mubr.f32.mxu0 0.0
        %995 = vmatmul.mubr.f32.gmra.mrb[0].mxu0 %v724
        %v996 = vpop.f32.mrb[0].mxu0
        %v997 = vadd.f32 0.0, %v996
        %v998 = vpop.f32.mrb[0].mxu0
        %999 = vmatprep.mubr.f32.mxu0 0.0
        %1000 = vmatmul.mubr.f32.gmra.mrb[0].mxu0 %v727
        %v1001 = vpop.f32.mrb[0].mxu0
        %v1002 = vadd.f32 0.0, %v1001
        %v1003 = vpop.f32.mrb[0].mxu0
        %1004 = vmatprep.mubr.f32.mxu0 0.0
        %1005 = vmatmul.mubr.f32.gmra.mrb[0].mxu0 %v730
        %v1006 = vpop.f32.mrb[0].mxu0
        %v1007 = vadd.f32 0.0, %v1006
        %v1008 = vpop.f32.mrb[0].mxu0
        %1009 = vmatprep.mubr.f32.mxu0 0.0
        %1010 = vmatmul.mubr.f32.gmra.mrb[0].mxu0 %v733
        %v1011 = vpop.f32.mrb[0].mxu0
        %v1012 = vadd.f32 0.0, %v1011
        %v1013 = vpop.f32.mrb[0].mxu0
        %1014 = vmatprep.mubr.f32.mxu0 0.0
        %1015 = vmatmul.mubr.f32.gmra.mrb[0].mxu0 %v736
        %v1016 = vpop.f32.mrb[0].mxu0
        %v1017 = vadd.f32 0.0, %v1016
        %v1018 = vpop.f32.mrb[0].mxu0
        %1019 = vmatprep.mubr.f32.mxu0 0.0
        %1020 = vmatmul.mubr.f32.gmra.mrb[0].mxu0 %v739
        %v1021 = vpop.f32.mrb[0].mxu0
        %v1022 = vadd.f32 0.0, %v1021
        %v1023 = vpop.f32.mrb[0].mxu0
        %1024 = vmatprep.mubr.f32.mxu0 0.0
        %1025 = vmatmul.mubr.f32.gmra.mrb[0].mxu0 %v742
        %v1026 = vpop.f32.mrb[0].mxu0
        %v1027 = vadd.f32 0.0, %v1026
        %v1028 = vpop.f32.mrb[0].mxu0
        %1029 = vmatprep.mubr.f32.mxu0 0.0
        %1030 = vmatmul.mubr.f32.gmra.mrb[0].mxu0 %v745
        %v1031 = vpop.f32.mrb[0].mxu0
        %v1032 = vadd.f32 0.0, %v1031
        %v1033 = vpop.f32.mrb[0].mxu0
        %1034 = vmatprep.mubr.f32.mxu0 0.0
        %1035 = vmatmul.mubr.f32.gmra.mrb[0].mxu0 %v748
        %v1036 = vpop.f32.mrb[0].mxu0
        %v1037 = vadd.f32 0.0, %v1036
        %v1038 = vpop.f32.mrb[0].mxu0
        %1039 = vmatprep.mubr.f32.mxu0 0.0
        %1040 = vmatmul.mubr.f32.gmra.mrb[0].mxu0 %v751
        %v1041 = vpop.f32.mrb[0].mxu0
        %v1042 = vadd.f32 0.0, %v1041
        %v1043 = vpop.f32.mrb[0].mxu0
        %1044 = vmatprep.mubr.f32.mxu0 0.0
        %1045 = vmatmul.mubr.f32.gmra.mrb[0].mxu0 %v754
        %v1046 = vpop.f32.mrb[0].mxu0
        %v1047 = vadd.f32 0.0, %v1046
        %v1048 = vpop.f32.mrb[0].mxu0
        %1049 = vmatprep.mubr.f32.mxu0 0.0
        %1050 = vmatmul.mubr.f32.gmra.mrb[0].mxu0 %v757
        %v1051 = vpop.f32.mrb[0].mxu0
        %v1052 = vadd.f32 0.0, %v1051
        %v1053 = vpop.f32.mrb[0].mxu0
        %1054 = vmatprep.mubr.f32.mxu0 0.0
        %1055 = vmatmul.mubr.f32.gmra.mrb[0].mxu0 %v912
        %v1056 = vpop.f32.mrb[0].mxu0
        %v1057 = vadd.f32 0.0, %v1056
        %v1058 = vpop.f32.mrb[0].mxu0
        %1059 = vmatprep.mubr.f32.mxu0 0.0
        %1060 = vmatmul.mubr.f32.gmra.mrb[0].mxu0 %v915
        %v1061 = vpop.f32.mrb[0].mxu0
        %v1062 = vadd.f32 0.0, %v1061
        %v1063 = vpop.f32.mrb[0].mxu0
        %1064 = vdwg.mxu0
        %v1065 = vadd.f32 %v830, %v987
        %v1066 = vadd.f32 %v835, %v992
        %v1067 = vadd.f32 %v840, %v997
        %v1068 = vadd.f32 %v845, %v1002
        %v1069 = vadd.f32 %v850, %v1007
        %v1070 = vadd.f32 %v855, %v1012
        %v1071 = vadd.f32 %v860, %v1017
        %v1072 = vadd.f32 %v865, %v1022
        %v1073 = vadd.f32 %v870, %v1027
        %v1074 = vadd.f32 %v875, %v1032
        %v1075 = vadd.f32 %v880, %v1037
        %v1076 = vadd.f32 %v885, %v1042
        %v1077 = vadd.f32 %v890, %v1047
        %v1078 = vadd.f32 %v895, %v1052
        %v1079 = vadd.f32 %v900, %v1057
        %v1080 = vadd.f32 %v905, %v1062
        %s1081 = scalar_lea.vmem %s3, 32
        %v1082 = vld [vmem:[%s1081] sm:$0xff]
        %v1083 = vld [vmem:[%s1081 + $0x8] sm:$0xf]
        %v1085 = vsel %vm710, %v700, 0
        %v1088 = vsel %vm710, %v701, 0
        %v1091 = vsel %vm759, %v1083, 0
        %1093 = vmatprep.subr.mxu0 0.0
        %1094 = vmatpush1.msra.mxu0 %v1082
        %1095 = vmatprep.subr.mxu0 0.0
        %1096 = vmatpush1.msra.mxu0 %v1091
        %1097 = vmatprep.subr.mxu0 0.0
        %1098 = vmatpush1.msra.mxu0 0.0
        %1099 = vmatprep.subr.mxu0 0.0
        %1100 = vmatpush1.msra.mxu0 0.0
        %1101 = vmatprep.subr.mxu0 0.0
        %1102 = vmatpush1.msra.mxu0 0.0
        %1103 = vmatprep.subr.mxu0 0.0
        %1104 = vmatpush1.msra.mxu0 0.0
        %1105 = vmatprep.subr.mxu0 0.0
        %1106 = vmatpush1.msra.mxu0 0.0
        %1107 = vmatprep.subr.mxu0 0.0
        %1108 = vmatpush1.msra.mxu0 0.0
        %1109 = vmatprep.subr.mxu0 0.0
        %1110 = vmatpush1.msra.mxu0 0.0
        %1111 = vmatprep.subr.mxu0 0.0
        %1112 = vmatpush1.msra.mxu0 0.0
        %1113 = vmatprep.subr.mxu0 0.0
        %1114 = vmatpush1.msra.mxu0 0.0
        %1115 = vmatprep.subr.mxu0 0.0
        %1116 = vmatpush1.msra.mxu0 0.0
        %1117 = vmatprep.subr.mxu0 0.0
        %1118 = vmatpush1.msra.mxu0 0.0
        %1119 = vmatprep.subr.mxu0 0.0
        %1120 = vmatpush1.msra.mxu0 0.0
        %1121 = vmatprep.subr.mxu0 0.0
        %1122 = vmatpush1.msra.mxu0 0.0
        %1123 = vmatprep.subr.mxu0 0.0
        %1124 = vmatpush1.msra.mxu0 0.0
        %1125 = vmatprep.subr.mxu0 0.0
        %1126 = vmatpush1.msra.mxu0 0.0
        %1127 = vmatprep.subr.mxu0 0.0
        %1128 = vmatpush1.msra.mxu0 0.0
        %1129 = vmatprep.subr.mxu0 0.0
        %1130 = vmatpush1.msra.mxu0 0.0
        %1131 = vmatprep.subr.mxu0 0.0
        %1132 = vmatpush1.msra.mxu0 0.0
        %1133 = vmatprep.subr.mxu0 0.0
        %1134 = vmatpush1.msra.mxu0 0.0
        %1135 = vmatprep.subr.mxu0 0.0
        %1136 = vmatpush1.msra.mxu0 0.0
        %1137 = vmatprep.subr.mxu0 0.0
        %1138 = vmatpush1.msra.mxu0 0.0
        %1139 = vmatprep.subr.mxu0 0.0
        %1140 = vmatpush1.msra.mxu0 0.0
        %1141 = vmatprep.subr.mxu0 0.0
        %1142 = vmatpush1.msra.mxu0 0.0
        %1143 = vmatprep.subr.mxu0 0.0
        %1144 = vmatpush1.msra.mxu0 0.0
        %1145 = vmatprep.subr.mxu0 0.0
        %1146 = vmatpush1.msra.mxu0 0.0
        %1147 = vmatprep.subr.mxu0 0.0
        %1148 = vmatpush1.msra.mxu0 0.0
        %1149 = vmatprep.subr.mxu0 0.0
        %1150 = vmatpush1.msra.mxu0 0.0
        %1151 = vmatprep.subr.mxu0 0.0
        %1152 = vmatpush1.msra.mxu0 0.0
        %1153 = vmatprep.subr.mxu0 0.0
        %1154 = vmatpush1.msra.mxu0 0.0
        %1155 = vmatprep.subr.mxu0 0.0
        %1156 = vmatpush1.msra.mxu0 0.0
        %1157 = vmatprep.mubr.f32.mxu0 0.0
        %1158 = vmatmul.mubr.f32.gmra.mrb[0].mxu0 %v724
        %v1159 = vpop.f32.mrb[0].mxu0
        %v1160 = vadd.f32 0.0, %v1159
        %v1161 = vpop.f32.mrb[0].mxu0
        %1162 = vmatprep.mubr.f32.mxu0 0.0
        %1163 = vmatmul.mubr.f32.gmra.mrb[0].mxu0 %v727
        %v1164 = vpop.f32.mrb[0].mxu0
        %v1165 = vadd.f32 0.0, %v1164
        %v1166 = vpop.f32.mrb[0].mxu0
        %1167 = vmatprep.mubr.f32.mxu0 0.0
        %1168 = vmatmul.mubr.f32.gmra.mrb[0].mxu0 %v730
        %v1169 = vpop.f32.mrb[0].mxu0
        %v1170 = vadd.f32 0.0, %v1169
        %v1171 = vpop.f32.mrb[0].mxu0
        %1172 = vmatprep.mubr.f32.mxu0 0.0
        %1173 = vmatmul.mubr.f32.gmra.mrb[0].mxu0 %v733
        %v1174 = vpop.f32.mrb[0].mxu0
        %v1175 = vadd.f32 0.0, %v1174
        %v1176 = vpop.f32.mrb[0].mxu0
        %1177 = vmatprep.mubr.f32.mxu0 0.0
        %1178 = vmatmul.mubr.f32.gmra.mrb[0].mxu0 %v736
        %v1179 = vpop.f32.mrb[0].mxu0
        %v1180 = vadd.f32 0.0, %v1179
        %v1181 = vpop.f32.mrb[0].mxu0
        %1182 = vmatprep.mubr.f32.mxu0 0.0
        %1183 = vmatmul.mubr.f32.gmra.mrb[0].mxu0 %v739
        %v1184 = vpop.f32.mrb[0].mxu0
        %v1185 = vadd.f32 0.0, %v1184
        %v1186 = vpop.f32.mrb[0].mxu0
        %1187 = vmatprep.mubr.f32.mxu0 0.0
        %1188 = vmatmul.mubr.f32.gmra.mrb[0].mxu0 %v742
        %v1189 = vpop.f32.mrb[0].mxu0
        %v1190 = vadd.f32 0.0, %v1189
        %v1191 = vpop.f32.mrb[0].mxu0
        %1192 = vmatprep.mubr.f32.mxu0 0.0
        %1193 = vmatmul.mubr.f32.gmra.mrb[0].mxu0 %v745
        %v1194 = vpop.f32.mrb[0].mxu0
        %v1195 = vadd.f32 0.0, %v1194
        %v1196 = vpop.f32.mrb[0].mxu0
        %1197 = vmatprep.mubr.f32.mxu0 0.0
        %1198 = vmatmul.mubr.f32.gmra.mrb[0].mxu0 %v748
        %v1199 = vpop.f32.mrb[0].mxu0
        %v1200 = vadd.f32 0.0, %v1199
        %v1201 = vpop.f32.mrb[0].mxu0
        %1202 = vmatprep.mubr.f32.mxu0 0.0
        %1203 = vmatmul.mubr.f32.gmra.mrb[0].mxu0 %v751
        %v1204 = vpop.f32.mrb[0].mxu0
        %v1205 = vadd.f32 0.0, %v1204
        %v1206 = vpop.f32.mrb[0].mxu0
        %1207 = vmatprep.mubr.f32.mxu0 0.0
        %1208 = vmatmul.mubr.f32.gmra.mrb[0].mxu0 %v754
        %v1209 = vpop.f32.mrb[0].mxu0
        %v1210 = vadd.f32 0.0, %v1209
        %v1211 = vpop.f32.mrb[0].mxu0
        %1212 = vmatprep.mubr.f32.mxu0 0.0
        %1213 = vmatmul.mubr.f32.gmra.mrb[0].mxu0 %v757
        %v1214 = vpop.f32.mrb[0].mxu0
        %v1215 = vadd.f32 0.0, %v1214
        %v1216 = vpop.f32.mrb[0].mxu0
        %1217 = vmatprep.mubr.f32.mxu0 0.0
        %1218 = vmatmul.mubr.f32.gmra.mrb[0].mxu0 %v912
        %v1219 = vpop.f32.mrb[0].mxu0
        %v1220 = vadd.f32 0.0, %v1219
        %v1221 = vpop.f32.mrb[0].mxu0
        %1222 = vmatprep.mubr.f32.mxu0 0.0
        %1223 = vmatmul.mubr.f32.gmra.mrb[0].mxu0 %v915
        %v1224 = vpop.f32.mrb[0].mxu0
        %v1225 = vadd.f32 0.0, %v1224
        %v1226 = vpop.f32.mrb[0].mxu0
        %1227 = vmatprep.mubr.f32.mxu0 0.0
        %1228 = vmatmul.mubr.f32.gmra.mrb[0].mxu0 %v1085
        %v1229 = vpop.f32.mrb[0].mxu0
        %v1230 = vadd.f32 0.0, %v1229
        %v1231 = vpop.f32.mrb[0].mxu0
        %1232 = vmatprep.mubr.f32.mxu0 0.0
        %1233 = vmatmul.mubr.f32.gmra.mrb[0].mxu0 %v1088
        %v1234 = vpop.f32.mrb[0].mxu0
        %v1235 = vadd.f32 0.0, %v1234
        %v1236 = vpop.f32.mrb[0].mxu0
        %1237 = vdwg.mxu0
        %v1238 = vadd.f32 %v1065, %v1160
        %v1239 = vadd.f32 %v1066, %v1165
        %v1240 = vadd.f32 %v1067, %v1170
        %v1241 = vadd.f32 %v1068, %v1175
        %v1242 = vadd.f32 %v1069, %v1180
        %v1243 = vadd.f32 %v1070, %v1185
        %v1244 = vadd.f32 %v1071, %v1190
        %v1245 = vadd.f32 %v1072, %v1195
        %v1246 = vadd.f32 %v1073, %v1200
        %v1247 = vadd.f32 %v1074, %v1205
        %v1248 = vadd.f32 %v1075, %v1210
        %v1249 = vadd.f32 %v1076, %v1215
        %v1250 = vadd.f32 %v1077, %v1220
        %v1251 = vadd.f32 %v1078, %v1225
        %v1252 = vadd.f32 %v1079, %v1230
        %v1253 = vadd.f32 %v1080, %v1235
        %v1254 = vsel %vm681, %v1238, 0.0
        %v1255 = vsel %vm681, %v1239, 0.0
        %v1256 = vadd.f32 %v1254, %v1255
        %v1257 = vsel %vm681, %v1240, 0.0
        %v1258 = vadd.f32 %v1256, %v1257
        %v1259 = vsel %vm681, %v1241, 0.0
        %v1260 = vadd.f32 %v1258, %v1259
        %v1261 = vsel %vm681, %v1242, 0.0
        %v1262 = vadd.f32 %v1260, %v1261
        %v1263 = vsel %vm681, %v1243, 0.0
        %v1264 = vadd.f32 %v1262, %v1263
        %v1265 = vsel %vm681, %v1244, 0.0
        %v1266 = vadd.f32 %v1264, %v1265
        %v1267 = vsel %vm681, %v1245, 0.0
        %v1268 = vadd.f32 %v1266, %v1267
        %v1269 = vsel %vm681, %v1246, 0.0
        %v1270 = vadd.f32 %v1268, %v1269
        %v1271 = vsel %vm681, %v1247, 0.0
        %v1272 = vadd.f32 %v1270, %v1271
        %v1273 = vsel %vm681, %v1248, 0.0
        %v1274 = vadd.f32 %v1272, %v1273
        %v1275 = vsel %vm681, %v1249, 0.0
        %v1276 = vadd.f32 %v1274, %v1275
        %v1277 = vsel %vm681, %v1250, 0.0
        %v1278 = vadd.f32 %v1276, %v1277
        %v1279 = vsel %vm681, %v1251, 0.0
        %v1280 = vadd.f32 %v1278, %v1279
        %v1281 = vsel %vm681, %v1252, 0.0
        %v1282 = vadd.f32 %v1280, %v1281
        %v1283 = vsel %vm681, %v1253, 0.0
        %v1284 = vadd.f32 %v1282, %v1283
        %v1285 = vrot.slane %v1284, 4
        %v1286 = vadd.f32 %v1284, %v1285
        %v1287 = vrot.slane %v1286, 2
        %v1288 = vadd.f32 %v1286, %v1287
        %v1289 = vrot.slane %v1288, 1
        %v1290 = vadd.f32 %v1288, %v1289
        %v1291 = vmul.f32 %v1238, %v1238
        %v1292 = vmul.f32 %v1239, %v1239
        %v1293 = vmul.f32 %v1240, %v1240
        %v1294 = vmul.f32 %v1241, %v1241
        %v1295 = vmul.f32 %v1242, %v1242
        %v1296 = vmul.f32 %v1243, %v1243
        %v1297 = vmul.f32 %v1244, %v1244
        %v1298 = vmul.f32 %v1245, %v1245
        %v1299 = vmul.f32 %v1246, %v1246
        %v1300 = vmul.f32 %v1247, %v1247
        %v1301 = vmul.f32 %v1248, %v1248
        %v1302 = vmul.f32 %v1249, %v1249
        %v1303 = vmul.f32 %v1250, %v1250
        %v1304 = vmul.f32 %v1251, %v1251
        %v1305 = vmul.f32 %v1252, %v1252
        %v1306 = vmul.f32 %v1253, %v1253
        %v1307 = vsel %vm681, %v1291, 0.0
        %v1308 = vsel %vm681, %v1292, 0.0
        %v1309 = vadd.f32 %v1307, %v1308
        %v1310 = vsel %vm681, %v1293, 0.0
        %v1311 = vadd.f32 %v1309, %v1310
        %v1312 = vsel %vm681, %v1294, 0.0
        %v1313 = vadd.f32 %v1311, %v1312
        %v1314 = vsel %vm681, %v1295, 0.0
        %v1315 = vadd.f32 %v1313, %v1314
        %v1316 = vsel %vm681, %v1296, 0.0
        %v1317 = vadd.f32 %v1315, %v1316
        %v1318 = vsel %vm681, %v1297, 0.0
        %v1319 = vadd.f32 %v1317, %v1318
        %v1320 = vsel %vm681, %v1298, 0.0
        %v1321 = vadd.f32 %v1319, %v1320
        %v1322 = vsel %vm681, %v1299, 0.0
        %v1323 = vadd.f32 %v1321, %v1322
        %v1324 = vsel %vm681, %v1300, 0.0
        %v1325 = vadd.f32 %v1323, %v1324
        %v1326 = vsel %vm681, %v1301, 0.0
        %v1327 = vadd.f32 %v1325, %v1326
        %v1328 = vsel %vm681, %v1302, 0.0
        %v1329 = vadd.f32 %v1327, %v1328
        %v1330 = vsel %vm681, %v1303, 0.0
        %v1331 = vadd.f32 %v1329, %v1330
        %v1332 = vsel %vm681, %v1304, 0.0
        %v1333 = vadd.f32 %v1331, %v1332
        %v1334 = vsel %vm681, %v1305, 0.0
        %v1335 = vadd.f32 %v1333, %v1334
        %v1336 = vsel %vm681, %v1306, 0.0
        %v1337 = vadd.f32 %v1335, %v1336
        %v1338 = vrot.slane %v1337, 4
        %v1339 = vadd.f32 %v1337, %v1338
        %v1340 = vrot.slane %v1339, 2
        %v1341 = vadd.f32 %v1339, %v1340
        %v1342 = vrot.slane %v1341, 1
        %v1343 = vadd.f32 %v1341, %v1342
        %v1344 = vsel %vm418, %v1290, %v1343
        %vm1345 = vcmask 58368
        %1346 = vst.msk [vmem:[%s336] sm:$0x3] %vm1345, %v1344
        %1347 = vst.msk [vmem:[%s375] sm:$0xff] %vm681, %v1238
        %1348 = vst.msk [vmem:[%s375 + $0x8] sm:$0xff] %vm681, %v1239
        %1349 = vst.msk [vmem:[%s375 + $0x10] sm:$0xff] %vm681, %v1240
        %1350 = vst.msk [vmem:[%s375 + $0x18] sm:$0xff] %vm681, %v1241
        %1351 = vst.msk [vmem:[%s375 + $0x20] sm:$0xff] %vm681, %v1242
        %1352 = vst.msk [vmem:[%s375 + $0x28] sm:$0xff] %vm681, %v1243
        %1353 = vst.msk [vmem:[%s375 + $0x30] sm:$0xff] %vm681, %v1244
        %1354 = vst.msk [vmem:[%s375 + $0x38] sm:$0xff] %vm681, %v1245
        %1355 = vst.msk [vmem:[%s375 + $0x40] sm:$0xff] %vm681, %v1246
        %1356 = vst.msk [vmem:[%s375 + $0x48] sm:$0xff] %vm681, %v1247
        %1357 = vst.msk [vmem:[%s375 + $0x50] sm:$0xff] %vm681, %v1248
        %1358 = vst.msk [vmem:[%s375 + $0x58] sm:$0xff] %vm681, %v1249
        %1359 = vst.msk [vmem:[%s375 + $0x60] sm:$0xff] %vm681, %v1250
        %1360 = vst.msk [vmem:[%s375 + $0x68] sm:$0xff] %vm681, %v1251
        %1361 = vst.msk [vmem:[%s375 + $0x70] sm:$0xff] %vm681, %v1252
        %1362 = vst.msk [vmem:[%s375 + $0x78] sm:$0xff] %vm681, %v1253
        %s1363 = smul.u32 8, %s26
        %p1364 = scmp.lt.s32.totalorder %s25, 1
        %s1365 = scalar_select %p1364, %s25, 1
        %p1366 = scmp.lt.s32.totalorder %s1363, 15
        %s1367 = scalar_select %p1366, %s1363, 15
        %s1368 = smul.addr %s1367, 2
        %s1369 = smul.addr %s1365, 32
        %s1370 = sadd.s32 %s1368, %s1369
        %s1371 = smul.addr %s1370, 8
        %s1372 = scalar_lea.vmem %s5, %s1371
        %s1373 = sand.u32 %s197, 1
        %s1374 = scalar_lea.sflag [#allocation3], %s1373
        %s1375 = sand.u32 %s197, 1
        %s1376 = smul.addr %s1375, 2
        %s1377 = scalar_lea.vmem [#allocation2], %s1376
        // Predicated region
        $region41: #{tpu_custom_call.1} parent=39 // pred_check
          %p1378 = pneg %p179
        $region42: #{tpu_custom_call.1} parent=39 // pred_check_branch
          %1380 = sbr.rel (%p1378) target = $region44
        $region43: #{tpu_custom_call.1} parent=39 // pred_region
          %s1381 = smul.u32 8, %s26
        $region44: #{tpu_custom_call.1} parent=39 // pred_fallthru
          _
        // Predicated region
        $region45: #{tpu_custom_call.1} parent=39 // pred_check
          %p1382 = pneg %p207
        $region46: #{tpu_custom_call.1} parent=39 // pred_check_branch
          %1384 = sbr.rel (%p1382) target = $region48
        $region47: #{tpu_custom_call.1} parent=39 // pred_region
          %s1386 = ssub.s32 32, 32
          %1387 = vsyncadd %s1374, %s1386
          %s1388 = smul.addr %s25, 2
          %s1389 = sadd.s32 %s26, %s1388
          %s1390 = smul.addr %s1389, 32
          %s1391 = scalar_lea.hbm %s6, %s1390
          %s1393 = sshll.u32 %s1377, 4
          %s1394 = int_to_ptr.vmem [resolvable:$true] %s1393
          %1396 = dma.vmem_to_hbm [thread:$0]  %s1394, 32, %s1391, %s1374
        $region48: #{tpu_custom_call.1} parent=39 // pred_fallthru
          _
      $region40: #{tpu_custom_call.1} parent=5 // pred_fallthru
        _
      %p1397 = scmp.le.s32.totalorder 2, %s16
      // Predicated region
      $region49: #{tpu_custom_call.1} parent=5 // pred_check
        %p1398 = pneg %p1397
      $region50: #{tpu_custom_call.1} parent=5 // pred_check_branch
        %1400 = sbr.rel (%p1398) target = $region52
      $region51: #{tpu_custom_call.1} parent=5 // pred_region
        %s1401 = ssub.s32 %s16, 2
        // Predicated region
        $region53: #{tpu_custom_call.1} parent=51 // pred_check
          %p1402 = pneg %p185
        $region54: #{tpu_custom_call.1} parent=51 // pred_check_branch
          %1404 = sbr.rel (%p1402) target = $region56
        $region55: #{tpu_custom_call.1} parent=51 // pred_region
          %s1405 = smul.u32 8, %s28
          %p1406 = scmp.lt.s32.totalorder %s27, 1
          %s1407 = scalar_select %p1406, %s27, 1
          %p1408 = scmp.lt.s32.totalorder %s1405, 15
          %s1409 = scalar_select %p1408, %s1405, 15
          %s1410 = smul.addr %s1409, 2
          %s1411 = smul.addr %s1407, 32
          %s1412 = sadd.s32 %s1410, %s1411
          %s1413 = smul.addr %s1412, 8
          %s1414 = scalar_lea.vmem %s5, %s1413
        $region56: #{tpu_custom_call.1} parent=51 // pred_fallthru
          _
        // Predicated region
        $region57: #{tpu_custom_call.1} parent=51 // pred_check
          %p1415 = pneg %p213
        $region58: #{tpu_custom_call.1} parent=51 // pred_check_branch
          %1417 = sbr.rel (%p1415) target = $region60
        $region59: #{tpu_custom_call.1} parent=51 // pred_region
          %s1418 = sand.u32 %s198, 1
          %s1419 = scalar_lea.sflag [#allocation3], %s1418
          %s1420 = sand.u32 %s198, 1
          %s1421 = smul.addr %s1420, 2
          %s1422 = scalar_lea.vmem [#allocation2], %s1421
          %1423 = dma.done %s1419, 32
        $region60: #{tpu_custom_call.1} parent=51 // pred_fallthru
          _
      $region52: #{tpu_custom_call.1} parent=5 // pred_fallthru
        _
    $region6: #{tpu_custom_call.1} parent=1 // loop_footer
      %s20 = sadd.s32 1, %s16
    $region7: #{tpu_custom_call.1} parent=1 // loop_footer_branch
      %15 = sbr.rel target = $region3
    $region8: #{tpu_custom_call.1} parent=1 // loop_exit
      _
    %1424 = vsyncpa [#allocation3], 1
    %s1425 = scalar_lea.sflag [#allocation3], 1
    %1426 = vsyncpa %s1425, 1

</llo_original>
